<compile_context>
chip_gen: v6e
topology: v6e:2x2x1
jax: 0.10.0
libtpu: 0.0.40
codegen_flags: <defaults>
</compile_context>

<pallas_src>
import jax
import jax.numpy as jnp
from jax.experimental import pallas as pl
from jax.experimental.pallas import tpu as pltpu

BN_EPS = 1e-5
LANE = 128


def _round_up(x, m):
    return (x + m - 1) // m * m


def _vmem_limit():
    """Per-generation scoped-VMEM request: ~75% of physical, capped at 100 MiB
    (v5e/v6e: 128 MiB physical -> 96 MiB; v7x: 64 MiB physical -> 48 MiB)."""
    cap = 64 * 1024 * 1024
    try:
        cap = int(getattr(pltpu.get_tpu_info(), "vmem_capacity_bytes", cap))
    except Exception:
        pass
    return int(min(100 * 1024 * 1024, cap * 3 // 4))


def _choose_tm(m, kp, cp, target=512):
    """Row-tile size: largest power-of-two <= target whose double-buffered
    patch/y blocks + resident weight fit half the VMEM budget; then shrink so
    the 'parallel' M axis has >= 2 tiles (megacore sharding on v7x)."""
    budget = _vmem_limit() // 2
    tm = target
    while tm > 8:
        need = (2 * tm * kp * 2          # double-buffered bf16 patch block
                + 2 * tm * cp * 2        # double-buffered bf16 y block
                + kp * cp * 2            # resident bf16 weight
                + 2 * 2 * cp * 4)        # stats block
        if need <= budget:
            break
        tm //= 2
    tm = max(tm, 8)
    if _round_up(m, 8) <= tm and m > 16:
        tm = _round_up((m + 1) // 2, 8)  # at least two M tiles when possible
    return tm


# --------------- kernel 1: conv matmul (resident weight) + BN stats --------- #
def _conv_stats_kernel(p_ref, w_ref, y_ref, st_ref):
    # p_ref : (TM, Kp)   bf16  im2col patch tile
    # w_ref : (Kp, Cp)   bf16  full conv-weight matrix (constant block -> fetched once)
    # y_ref : (TM, Cp)   bf16  pre-BN conv output tile
    # st_ref: (1, 2, Cp) f32   per-M-tile [sum, sum_sq] over rows (from f32 acc)
    acc = jnp.dot(p_ref[...], w_ref[...], preferred_element_type=jnp.float32)
    y_ref[...] = acc.astype(y_ref.dtype)
    st_ref[0, 0:1, :] = jnp.sum(acc, axis=0, keepdims=True)
    st_ref[0, 1:2, :] = jnp.sum(acc * acc, axis=0, keepdims=True)


def _conv_with_stats(patches, w_mat, *, tm):
    m_pad, kp = patches.shape
    cp = w_mat.shape[1]
    n_m = m_pad // tm
    return pl.pallas_call(
        _conv_stats_kernel,
        out_shape=(jax.ShapeDtypeStruct((m_pad, cp), jnp.bfloat16),
                   jax.ShapeDtypeStruct((n_m, 2, cp), jnp.float32)),
        grid_spec=pltpu.PrefetchScalarGridSpec(
            num_scalar_prefetch=0,
            grid=(n_m,),
            in_specs=[
                pl.BlockSpec((tm, kp), lambda i: (i, 0)),
                pl.BlockSpec((kp, cp), lambda i: (0, 0)),   # grid-resident weight
            ],
            out_specs=[
                pl.BlockSpec((tm, cp), lambda i: (i, 0)),
                pl.BlockSpec((1, 2, cp), lambda i: (i, 0, 0)),
            ],
        ),
        compiler_params=pltpu.CompilerParams(
            dimension_semantics=("parallel",),
            vmem_limit_bytes=_vmem_limit(),
        ),
    )(patches, w_mat)


# ----------------- kernel 2: fused folded-BN affine + ReLU ------------------ #
def _scale_shift_relu_kernel(y_ref, sc_ref, sh_ref, o_ref):
    co = o_ref.shape[-1]                       # true cout (<= padded Cp)
    v = y_ref[...].astype(jnp.float32) * sc_ref[...] + sh_ref[...]
    o_ref[...] = jnp.maximum(v, 0.0)[:, :co].astype(o_ref.dtype)


def _scale_shift_relu(y, scale, shift, *, tm, out_channels, out_dtype):
    m_pad, cp = y.shape
    return pl.pallas_call(
        _scale_shift_relu_kernel,
        out_shape=jax.ShapeDtypeStruct((m_pad, out_channels), out_dtype),
        grid_spec=pltpu.PrefetchScalarGridSpec(
            num_scalar_prefetch=0,
            grid=(m_pad // tm,),
            in_specs=[
                pl.BlockSpec((tm, cp), lambda i: (i, 0)),
                pl.BlockSpec((1, cp), lambda i: (0, 0)),
                pl.BlockSpec((1, cp), lambda i: (0, 0)),
            ],
            out_specs=pl.BlockSpec((tm, out_channels), lambda i: (i, 0)),
        ),
        compiler_params=pltpu.CompilerParams(
            dimension_semantics=("parallel",),
            vmem_limit_bytes=_vmem_limit(),
        ),
    )(y, scale, shift)


# -------------------------------- JAX glue ---------------------------------- #
def _im2col_3x3(x_nhwc):
    """3x3, stride 1, pad 1 im2col: (N,H,W,C) -> (N*H*W, 9*C), cols = (kh,kw,ci)."""
    n, h, w, c = x_nhwc.shape
    xp = jnp.pad(x_nhwc, ((0, 0), (1, 1), (1, 1), (0, 0)))
    cols = [xp[:, dh:dh + h, dw:dw + w, :].reshape(n * h * w, c)
            for dh in range(3) for dw in range(3)]
    return jnp.concatenate(cols, axis=1)


def _w_to_mat(w_oihw, k_pad, cout_pad):
    """PyTorch (Cout,Cin,3,3) -> (k_pad, cout_pad) bf16, rows ordered (kh,kw,ci)."""
    cout, cin = w_oihw.shape[0], w_oihw.shape[1]
    m = jnp.transpose(w_oihw, (2, 3, 1, 0)).astype(jnp.float32)   # (3,3,Cin,Cout)
    m = m.reshape(9 * cin, cout)
    m = jnp.pad(m, ((0, k_pad - 9 * cin), (0, cout_pad - cout)))
    return m.astype(jnp.bfloat16)


def _pad_vec(v, cp):
    return jnp.pad(v.astype(jnp.float32), (0, cp - v.shape[0]))


def _finalize_bn(stats, m_rows, gamma_p, beta_p):
    """Per-tile (sum, sum_sq) partials -> folded per-channel scale/shift.
    Divide by the TRUE row count so zero-padded rows don't bias mean/var."""
    tot = jnp.sum(stats, axis=0)                     # (2, Cp)
    mean = tot[0] / m_rows
    var = jnp.maximum(tot[1] / m_rows - mean * mean, 0.0)
    scale = gamma_p * jax.lax.rsqrt(var + BN_EPS)
    shift = beta_p - mean * scale
    return scale.reshape(1, -1), shift.reshape(1, -1)


def double_conv(x_nchw, params):
    n, cin, h, w = x_nchw.shape
    cout = params["w1"].shape[0]
    m = n * h * w
    cp = _round_up(cout, LANE)              # lane-dense padded channel count
    k1p = _round_up(9 * cin, LANE)
    k2p = _round_up(9 * cout, LANE)         # stage-2 K from TRUE cout (no Cp inflation)

    tm = _choose_tm(m, max(k1p, k2p), cp)
    m_pad = _round_up(m, tm)

    x = jnp.transpose(x_nchw, (0, 2, 3, 1)).astype(jnp.bfloat16)   # NHWC bf16

    # ---- stage 1: conv1 (bf16 out) + per-tile BN stats ----
    p1 = _im2col_3x3(x)                                            # (M, 9*cin) bf16
    p1 = jnp.pad(p1, ((0, m_pad - m), (0, k1p - 9 * cin)))
    w1m = _w_to_mat(params["w1"], k1p, cp)                         # (K1p, Cp) bf16
    y1, st1 = _conv_with_stats(p1, w1m, tm=tm)
    sc1, sh1 = _finalize_bn(st1, m, _pad_vec(params["g1"], cp),
                            _pad_vec(params["b1"], cp))

    # ---- BN1 + ReLU (folded affine), bf16, only the true cout channels ----
    a1 = _scale_shift_relu(y1, sc1, sh1, tm=tm,
                           out_channels=cout, out_dtype=jnp.bfloat16)

    # ---- stage 2: conv2 (bf16 out) + per-tile BN stats ----
    a1 = a1[:m].reshape(n, h, w, cout)
    p2 = _im2col_3x3(a1)                                           # (M, 9*cout) bf16
    p2 = jnp.pad(p2, ((0, m_pad - m), (0, k2p - 9 * cout)))
    w2m = _w_to_mat(params["w2"], k2p, cp)                         # (K2p, Cp) bf16
    y2, st2 = _conv_with_stats(p2, w2m, tm=tm)
    sc2, sh2 = _finalize_bn(st2, m, _pad_vec(params["g2"], cp),
                            _pad_vec(params["b2"], cp))

    # ---- BN2 + ReLU, f32, only the true cout channels, back to NCHW ----
    out = _scale_shift_relu(y2, sc2, sh2, tm=tm,
                            out_channels=cout, out_dtype=jnp.float32)
    out = out[:m].reshape(n, h, w, cout)
    return jnp.transpose(out, (0, 3, 1, 2))


# ---------------------------- pure-JAX reference ---------------------------- #
def _reference(x_nchw, params):
    def conv(x, w):
        return jax.lax.conv_general_dilated(
            x, w, window_strides=(1, 1), padding=((1, 1), (1, 1)),
            dimension_numbers=("NCHW", "OIHW", "NCHW"),
            precision=jax.lax.Precision.HIGHEST,
        )

    def bn_relu(y, g, b):
        mean = jnp.mean(y, axis=(0, 2, 3), keepdims=True)
        var = jnp.mean(jnp.square(y - mean), axis=(0, 2, 3), keepdims=True)
        yn = (y - mean) * jax.lax.rsqrt(var + BN_EPS)
        yn = yn * g.reshape(1, -1, 1, 1) + b.reshape(1, -1, 1, 1)
        return jnp.maximum(yn, 0.0)

    y = bn_relu(conv(x_nchw, params["w1"]), params["g1"], params["b1"])
    y = bn_relu(conv(y, params["w2"]), params["g2"], params["b2"])
    return y


# ----------------------------------- main ----------------------------------- #
if __name__ == "__main__":
    key = jax.random.PRNGKey(0)
    k_x, k_w1, k_w2, k_g1, k_b1, k_g2, k_b2 = jax.random.split(key, 7)

    N, CIN, COUT, H, W = 2, 4, 8, 16, 16
    x = jax.random.normal(k_x, (N, CIN, H, W), dtype=jnp.float32)

    params = {
        "w1": jax.random.normal(k_w1, (COUT, CIN, 3, 3), jnp.float32) * 0.2,
        "w2": jax.random.normal(k_w2, (COUT, COUT, 3, 3), jnp.float32) * 0.2,
        "g1": jax.random.uniform(k_g1, (COUT,), jnp.float32, 0.5, 1.5),
        "b1": jax.random.normal(k_b1, (COUT,), jnp.float32) * 0.1,
        "g2": jax.random.uniform(k_g2, (COUT,), jnp.float32, 0.5, 1.5),
        "b2": jax.random.normal(k_b2, (COUT,), jnp.float32) * 0.1,
    }

    out = jax.block_until_ready(jax.jit(double_conv)(x, params))
    ref = jax.block_until_ready(_reference(x, params))

    assert out.shape == (N, COUT, H, W), out.shape
    # bf16 MXU inputs + bf16-stored conv outputs across two conv+BN stages vs a
    # full-f32 HIGHEST-precision reference -> bf16-level tolerance.
    max_err = float(jnp.max(jnp.abs(out - ref)))
    assert jnp.allclose(out, ref, rtol=2e-2, atol=5e-2), max_err
    print("KERNEL_OK")
</pallas_src>

<mosaic_0001>
module attributes {stable_mosaic.version = 11 : i64} {
  func.func @_conv_stats_kernel(%arg0: i32, %arg1: memref<256x128xbf16, #tpu.memory_space<vmem>>, %arg2: memref<128x128xbf16, #tpu.memory_space<vmem>>, %arg3: memref<256x128xbf16, #tpu.memory_space<vmem>>, %arg4: memref<1x2x128xf32, #tpu.memory_space<vmem>>) attributes {dimension_semantics = [#tpu.dimension_semantics<parallel>], iteration_bounds = array<i64: 2>, scalar_prefetch = 0 : i64, scratch_operands = 0 : i64, tpu.core_type = #tpu.core_type<tc>, window_params = [{transform_indices = @transform_0, window_bounds = array<i64: 256, 128>}, {pipeline_mode = #tpu.pipeline_mode<synchronous>, transform_indices = @transform_1, window_bounds = array<i64: 128, 128>}, {transform_indices = @transform_2, window_bounds = array<i64: 256, 128>}, {transform_indices = @transform_3, window_bounds = array<i64: 1, 2, 128>}]} {
    %c0 = arith.constant 0 : index
    %c0_0 = arith.constant 0 : index
    %0 = vector.load %arg1[%c0, %c0_0] : memref<256x128xbf16, #tpu.memory_space<vmem>>, vector<256x128xbf16>
    %c0_1 = arith.constant 0 : index
    %c0_2 = arith.constant 0 : index
    %1 = vector.load %arg2[%c0_1, %c0_2] : memref<128x128xbf16, #tpu.memory_space<vmem>>, vector<128x128xbf16>
    %cst = arith.constant dense<0.000000e+00> : vector<256x128xf32>
    %2 = tpu.matmul %0, %1, %cst {dimension_numbers = #tpu.dot_dimension_numbers<[1], [0], [0], [1], [0, 0, 1, 1], [], []>} : vector<256x128xbf16>, vector<128x128xbf16>, vector<256x128xf32> -> vector<256x128xf32>
    %3 = arith.truncf %2 : vector<256x128xf32> to vector<256x128xbf16>
    %c0_3 = arith.constant 0 : index
    %c0_4 = arith.constant 0 : index
    %4 = vector.load %arg3[%c0_3, %c0_4] : memref<256x128xbf16, #tpu.memory_space<vmem>>, vector<256x128xbf16>
    tpu.vector_store %arg3[%c0_3, %c0_4], %3 {strides = array<i32>} : memref<256x128xbf16, #tpu.memory_space<vmem>>, vector<256x128xbf16>,
    %cst_5 = arith.constant dense<0.000000e+00> : vector<128xf32>
    %5 = vector.multi_reduction <add>, %2, %cst_5 [0] : vector<256x128xf32> to vector<128xf32>
    %6 = vector.shape_cast %5 : vector<128xf32> to vector<1x128xf32>
    %c0_6 = arith.constant 0 : index
    %c0_7 = arith.constant 0 : index
    %c0_8 = arith.constant 0 : index
    %7 = vector.load %arg4[%c0_6, %c0_7, %c0_8] : memref<1x2x128xf32, #tpu.memory_space<vmem>>, vector<1x1x128xf32>
    %8 = vector.shape_cast %7 : vector<1x1x128xf32> to vector<1x128xf32>
    %9 = vector.shape_cast %6 : vector<1x128xf32> to vector<1x1x128xf32>
    tpu.vector_store %arg4[%c0_6, %c0_7, %c0_8], %9 {strides = array<i32>} : memref<1x2x128xf32, #tpu.memory_space<vmem>>, vector<1x1x128xf32>,
    %10 = arith.mulf %2, %2 : vector<256x128xf32>
    %cst_9 = arith.constant dense<0.000000e+00> : vector<128xf32>
    %11 = vector.multi_reduction <add>, %10, %cst_9 [0] : vector<256x128xf32> to vector<128xf32>
    %12 = vector.shape_cast %11 : vector<128xf32> to vector<1x128xf32>
    %c0_10 = arith.constant 0 : index
    %c1 = arith.constant 1 : index
    %c0_11 = arith.constant 0 : index
    %13 = vector.load %arg4[%c0_10, %c1, %c0_11] : memref<1x2x128xf32, #tpu.memory_space<vmem>>, vector<1x1x128xf32>
    %14 = vector.shape_cast %13 : vector<1x1x128xf32> to vector<1x128xf32>
    %15 = vector.shape_cast %12 : vector<1x128xf32> to vector<1x1x128xf32>
    tpu.vector_store %arg4[%c0_10, %c1, %c0_11], %15 {strides = array<i32>} : memref<1x2x128xf32, #tpu.memory_space<vmem>>, vector<1x1x128xf32>,
    return
  }
  func.func @transform_0(%arg0: i32) -> (i32, i32) {
    %c0_i32 = arith.constant 0 : i32
    %c0_i32_0 = arith.constant 0 : i32
    return %arg0, %c0_i32 : i32, i32
  }
  func.func @transform_1(%arg0: i32) -> (i32, i32) {
    %c0_i32 = arith.constant 0 : i32
    %c0_i32_0 = arith.constant 0 : i32
    %c0_i32_1 = arith.constant 0 : i32
    return %c0_i32, %c0_i32_0 : i32, i32
  }
  func.func @transform_2(%arg0: i32) -> (i32, i32) {
    %c0_i32 = arith.constant 0 : i32
    %c0_i32_0 = arith.constant 0 : i32
    return %arg0, %c0_i32 : i32, i32
  }
  func.func @transform_3(%arg0: i32) -> (i32, i32, i32) {
    %c0_i32 = arith.constant 0 : i32
    %c0_i32_0 = arith.constant 0 : i32
    %c0_i32_1 = arith.constant 0 : i32
    return %arg0, %c0_i32, %c0_i32_0 : i32, i32, i32
  }
}

module attributes {stable_mosaic.version = 11 : i64} {
  func.func @_scale_shift_relu_kernel(%arg0: i32, %arg1: memref<256x128xbf16, #tpu.memory_space<vmem>>, %arg2: memref<1x128xf32, #tpu.memory_space<vmem>>, %arg3: memref<1x128xf32, #tpu.memory_space<vmem>>, %arg4: memref<256x8xbf16, #tpu.memory_space<vmem>>) attributes {dimension_semantics = [#tpu.dimension_semantics<parallel>], iteration_bounds = array<i64: 2>, scalar_prefetch = 0 : i64, scratch_operands = 0 : i64, tpu.core_type = #tpu.core_type<tc>, window_params = [{transform_indices = @transform_0, window_bounds = array<i64: 256, 128>}, {pipeline_mode = #tpu.pipeline_mode<synchronous>, transform_indices = @transform_1, window_bounds = array<i64: 1, 128>}, {pipeline_mode = #tpu.pipeline_mode<synchronous>, transform_indices = @transform_2, window_bounds = array<i64: 1, 128>}, {transform_indices = @transform_3, window_bounds = array<i64: 256, 8>}]} {
    %c0 = arith.constant 0 : index
    %c0_0 = arith.constant 0 : index
    %0 = vector.load %arg1[%c0, %c0_0] : memref<256x128xbf16, #tpu.memory_space<vmem>>, vector<256x128xbf16>
    %1 = arith.extf %0 : vector<256x128xbf16> to vector<256x128xf32>
    %c0_1 = arith.constant 0 : index
    %c0_2 = arith.constant 0 : index
    %2 = vector.load %arg2[%c0_1, %c0_2] : memref<1x128xf32, #tpu.memory_space<vmem>>, vector<1x128xf32>
    %3 = vector.broadcast %2 : vector<1x128xf32> to vector<256x128xf32>
    %4 = arith.mulf %1, %3 : vector<256x128xf32>
    %c0_3 = arith.constant 0 : index
    %c0_4 = arith.constant 0 : index
    %5 = vector.load %arg3[%c0_3, %c0_4] : memref<1x128xf32, #tpu.memory_space<vmem>>, vector<1x128xf32>
    %6 = vector.broadcast %5 : vector<1x128xf32> to vector<256x128xf32>
    %7 = arith.addf %4, %6 : vector<256x128xf32>
    %cst = arith.constant 0.000000e+00 : f32
    %8 = vector.broadcast %cst : f32 to vector<256x128xf32>
    %9 = arith.maximumf %7, %8 : vector<256x128xf32>
    %10 = vector.extract_strided_slice %9 {offsets = [0, 0], sizes = [256, 8], strides = [1, 1]} : vector<256x128xf32> to vector<256x8xf32>
    %11 = arith.truncf %10 : vector<256x8xf32> to vector<256x8xbf16>
    %c0_5 = arith.constant 0 : index
    %c0_6 = arith.constant 0 : index
    %12 = vector.load %arg4[%c0_5, %c0_6] : memref<256x8xbf16, #tpu.memory_space<vmem>>, vector<256x8xbf16>
    tpu.vector_store %arg4[%c0_5, %c0_6], %11 {strides = array<i32>} : memref<256x8xbf16, #tpu.memory_space<vmem>>, vector<256x8xbf16>,
    return
  }
  func.func @transform_0(%arg0: i32) -> (i32, i32) {
    %c0_i32 = arith.constant 0 : i32
    %c0_i32_0 = arith.constant 0 : i32
    return %arg0, %c0_i32 : i32, i32
  }
  func.func @transform_1(%arg0: i32) -> (i32, i32) {
    %c0_i32 = arith.constant 0 : i32
    %c0_i32_0 = arith.constant 0 : i32
    %c0_i32_1 = arith.constant 0 : i32
    return %c0_i32, %c0_i32_0 : i32, i32
  }
  func.func @transform_2(%arg0: i32) -> (i32, i32) {
    %c0_i32 = arith.constant 0 : i32
    %c0_i32_0 = arith.constant 0 : i32
    %c0_i32_1 = arith.constant 0 : i32
    return %c0_i32, %c0_i32_0 : i32, i32
  }
  func.func @transform_3(%arg0: i32) -> (i32, i32) {
    %c0_i32 = arith.constant 0 : i32
    %c0_i32_0 = arith.constant 0 : i32
    return %arg0, %c0_i32 : i32, i32
  }
}

module attributes {stable_mosaic.version = 11 : i64} {
  func.func @_scale_shift_relu_kernel(%arg0: i32, %arg1: memref<256x128xbf16, #tpu.memory_space<vmem>>, %arg2: memref<1x128xf32, #tpu.memory_space<vmem>>, %arg3: memref<1x128xf32, #tpu.memory_space<vmem>>, %arg4: memref<256x8xf32, #tpu.memory_space<vmem>>) attributes {dimension_semantics = [#tpu.dimension_semantics<parallel>], iteration_bounds = array<i64: 2>, scalar_prefetch = 0 : i64, scratch_operands = 0 : i64, tpu.core_type = #tpu.core_type<tc>, window_params = [{transform_indices = @transform_0, window_bounds = array<i64: 256, 128>}, {pipeline_mode = #tpu.pipeline_mode<synchronous>, transform_indices = @transform_1, window_bounds = array<i64: 1, 128>}, {pipeline_mode = #tpu.pipeline_mode<synchronous>, transform_indices = @transform_2, window_bounds = array<i64: 1, 128>}, {transform_indices = @transform_3, window_bounds = array<i64: 256, 8>}]} {
    %c0 = arith.constant 0 : index
    %c0_0 = arith.constant 0 : index
    %0 = vector.load %arg1[%c0, %c0_0] : memref<256x128xbf16, #tpu.memory_space<vmem>>, vector<256x128xbf16>
    %1 = arith.extf %0 : vector<256x128xbf16> to vector<256x128xf32>
    %c0_1 = arith.constant 0 : index
    %c0_2 = arith.constant 0 : index
    %2 = vector.load %arg2[%c0_1, %c0_2] : memref<1x128xf32, #tpu.memory_space<vmem>>, vector<1x128xf32>
    %3 = vector.broadcast %2 : vector<1x128xf32> to vector<256x128xf32>
    %4 = arith.mulf %1, %3 : vector<256x128xf32>
    %c0_3 = arith.constant 0 : index
    %c0_4 = arith.constant 0 : index
    %5 = vector.load %arg3[%c0_3, %c0_4] : memref<1x128xf32, #tpu.memory_space<vmem>>, vector<1x128xf32>
    %6 = vector.broadcast %5 : vector<1x128xf32> to vector<256x128xf32>
    %7 = arith.addf %4, %6 : vector<256x128xf32>
    %cst = arith.constant 0.000000e+00 : f32
    %8 = vector.broadcast %cst : f32 to vector<256x128xf32>
    %9 = arith.maximumf %7, %8 : vector<256x128xf32>
    %10 = vector.extract_strided_slice %9 {offsets = [0, 0], sizes = [256, 8], strides = [1, 1]} : vector<256x128xf32> to vector<256x8xf32>
    %c0_5 = arith.constant 0 : index
    %c0_6 = arith.constant 0 : index
    %11 = vector.load %arg4[%c0_5, %c0_6] : memref<256x8xf32, #tpu.memory_space<vmem>>, vector<256x8xf32>
    tpu.vector_store %arg4[%c0_5, %c0_6], %10 {strides = array<i32>} : memref<256x8xf32, #tpu.memory_space<vmem>>, vector<256x8xf32>,
    return
  }
  func.func @transform_0(%arg0: i32) -> (i32, i32) {
    %c0_i32 = arith.constant 0 : i32
    %c0_i32_0 = arith.constant 0 : i32
    return %arg0, %c0_i32 : i32, i32
  }
  func.func @transform_1(%arg0: i32) -> (i32, i32) {
    %c0_i32 = arith.constant 0 : i32
    %c0_i32_0 = arith.constant 0 : i32
    %c0_i32_1 = arith.constant 0 : i32
    return %c0_i32, %c0_i32_0 : i32, i32
  }
  func.func @transform_2(%arg0: i32) -> (i32, i32) {
    %c0_i32 = arith.constant 0 : i32
    %c0_i32_0 = arith.constant 0 : i32
    %c0_i32_1 = arith.constant 0 : i32
    return %c0_i32, %c0_i32_0 : i32, i32
  }
  func.func @transform_3(%arg0: i32) -> (i32, i32) {
    %c0_i32 = arith.constant 0 : i32
    %c0_i32_0 = arith.constant 0 : i32
    return %arg0, %c0_i32 : i32, i32
  }
}

</mosaic_0001>

<llo_original>
// kernel: double_conv.4
$region0: #{double_conv.4}
  #allocation0 [shape = 'u32[]', space=smem, size = 0x4, offset = 0x4, fixed_abs, tag = 'smem constant byte address 0x4 - core index']
  #allocation1 [shape = 'u32[144,128]{1,0:T(1,128)}', space=vmem, size = 0x12000, scoped, tag = 'internal scratch']
  %s0 = inlined_call_operand.vmem [shape: bf16[512,128], index: 0, kind: input, shape index: {}]
  %s1 = inlined_call_operand.vmem [shape: bf16[128,128], index: 1, kind: input, shape index: {}]
  %s2 = inlined_call_operand.vmem [shape: bf16[512,128], index: 2, kind: output, shape index: {0}]
  %s3 = inlined_call_operand.vmem [shape: f32[2,2,128], index: 3, kind: output, shape index: {1}]
  %4 = xla_tuple %s2, %s3
  %s5 = sld [smem:[#allocation0]]
  $region49: #{double_conv.4} parent=0
    _
  %s7 = ssub.s32 1, %s5
  %s8 = scalar_select 0, %s7, %s5
  loop: start=0, step=1, limit=4
  $region2: #{double_conv.4} parent=0 // loop_pre_header
    _
  $region3: #{double_conv.4} parent=0 // loop_header
    %s10 = sphi 0, %s14
    %p11 = scmp.ge.s32.totalorder %s10, 4
    %s20 = sphi 0, %s22
    %s23 = sphi 0, %s20
    %s24 = sphi 0, %s23
    %s40 = sphi 0, %s24
    %s44 = sphi 0, %s44
    %s46 = sphi 0, %s44
    %s47 = sphi 0, %s46
    %s61 = sphi 0, %s47
    %s67 = sphi 0, %s69
    %s70 = sphi 0, %s67
    %s71 = sphi 0, %s70
    %s87 = sphi 0, %s71
    %s93 = sphi 0, %s95
    %s96 = sphi 0, %s93
    %s97 = sphi 0, %s96
    %s113 = sphi 0, %s97
  $region4: #{double_conv.4} parent=0 // loop_header_branch
    %13 = sbr.rel (%p11) target = $region8
  $region5: #{double_conv.4} parent=0 // loop_body
    %s15 = ssub.s32 %s10, 1
    %s16 = ssub.s32 %s10, 2
    %s17 = sadd.s32 %s10, 1
    %s18 = ssub.s32 %s10, %s17
    %p19 = scmp.eq.s32.totalorder %s18, 0
    %s21 = sadd.s32 %s20, 1
    %s22 = scalar_select %p19, %s20, %s21
    %p25 = pneg %p19
    %p26 = scmp.eq.s32.totalorder %s10, 1
    %p27 = por %p25, %p26
    %p28 = scmp.ne.s32.totalorder %s20, %s23
    %p29 = scmp.eq.s32.totalorder %s10, 0
    %p30 = por %p28, %p29
    %p31 = scmp.ne.s32.totalorder %s20, %s23
    %p32 = scmp.eq.s32.totalorder %s15, 1
    %p33 = por %p31, %p32
    %p34 = scmp.ne.s32.totalorder %s23, %s24
    %p35 = scmp.eq.s32.totalorder %s15, 0
    %p36 = por %p34, %p35
    %p37 = scmp.ne.s32.totalorder %s23, %s24
    %p38 = scmp.eq.s32.totalorder %s16, 1
    %p39 = por %p37, %p38
    %p41 = scmp.ne.s32.totalorder %s24, %s40
    %p42 = scmp.eq.s32.totalorder %s16, 0
    %p43 = por %p41, %p42
    %s45 = sadd.s32 %s44, 1
    %p48 = scmp.eq.s32.totalorder %s10, 1
    %p49 = scmp.ne.s32.totalorder %s44, %s46
    %p50 = scmp.eq.s32.totalorder %s10, 0
    %p51 = por %p49, %p50
    %p52 = scmp.ne.s32.totalorder %s44, %s46
    %p53 = scmp.eq.s32.totalorder %s15, 1
    %p54 = por %p52, %p53
    %p55 = scmp.ne.s32.totalorder %s46, %s47
    %p56 = scmp.eq.s32.totalorder %s15, 0
    %p57 = por %p55, %p56
    %p58 = scmp.ne.s32.totalorder %s46, %s47
    %p59 = scmp.eq.s32.totalorder %s16, 1
    %p60 = por %p58, %p59
    %p62 = scmp.ne.s32.totalorder %s47, %s61
    %p63 = scmp.eq.s32.totalorder %s16, 0
    %p64 = por %p62, %p63
    %s65 = ssub.s32 %s10, %s17
    %p66 = scmp.eq.s32.totalorder %s65, 0
    %s68 = sadd.s32 %s67, 1
    %s69 = scalar_select %p66, %s67, %s68
    %p72 = pneg %p66
    %p73 = scmp.eq.s32.totalorder %s10, 1
    %p74 = por %p72, %p73
    %p75 = scmp.ne.s32.totalorder %s67, %s70
    %p76 = scmp.eq.s32.totalorder %s10, 0
    %p77 = por %p75, %p76
    %p78 = scmp.ne.s32.totalorder %s67, %s70
    %p79 = scmp.eq.s32.totalorder %s15, 1
    %p80 = por %p78, %p79
    %p81 = scmp.ne.s32.totalorder %s70, %s71
    %p82 = scmp.eq.s32.totalorder %s15, 0
    %p83 = por %p81, %p82
    %p84 = scmp.ne.s32.totalorder %s70, %s71
    %p85 = scmp.eq.s32.totalorder %s16, 1
    %p86 = por %p84, %p85
    %p88 = scmp.ne.s32.totalorder %s71, %s87
    %p89 = scmp.eq.s32.totalorder %s16, 0
    %p90 = por %p88, %p89
    %s91 = ssub.s32 %s10, %s17
    %p92 = scmp.eq.s32.totalorder %s91, 0
    %s94 = sadd.s32 %s93, 1
    %s95 = scalar_select %p92, %s93, %s94
    %p98 = pneg %p92
    %p99 = scmp.eq.s32.totalorder %s10, 1
    %p100 = por %p98, %p99
    %p101 = scmp.ne.s32.totalorder %s93, %s96
    %p102 = scmp.eq.s32.totalorder %s10, 0
    %p103 = por %p101, %p102
    %p104 = scmp.ne.s32.totalorder %s93, %s96
    %p105 = scmp.eq.s32.totalorder %s15, 1
    %p106 = por %p104, %p105
    %p107 = scmp.ne.s32.totalorder %s96, %s97
    %p108 = scmp.eq.s32.totalorder %s15, 0
    %p109 = por %p107, %p108
    %p110 = scmp.ne.s32.totalorder %s96, %s97
    %p111 = scmp.eq.s32.totalorder %s16, 1
    %p112 = por %p110, %p111
    %p114 = scmp.ne.s32.totalorder %s97, %s113
    %p115 = scmp.eq.s32.totalorder %s16, 0
    %p116 = por %p114, %p115
    %p117 = scmp.le.s32.totalorder 1, %s10
    %p118 = scmp.lt.s32.totalorder %s10, 3
    %p119 = pnand %p117, %p118
    %p120 = pneg %p119
    // Predicated region
    $region9: #{double_conv.4} parent=5 // pred_check
      _
    $region10: #{double_conv.4} parent=5 // pred_check_branch
      %122 = sbr.rel (%p119) target = $region12
    $region11: #{double_conv.4} parent=5 // pred_region
      %s123 = ssub.s32 %s10, 1
      // Predicated region
      $region13: #{double_conv.4} parent=11 // pred_check
        %p124 = pneg %p57
      $region14: #{double_conv.4} parent=11 // pred_check_branch
        %126 = sbr.rel (%p124) target = $region16
      $region15: #{double_conv.4} parent=11 // pred_region
        _
      $region16: #{double_conv.4} parent=11 // pred_fallthru
        _
    $region12: #{double_conv.4} parent=5 // pred_fallthru
      _
    %p127 = scmp.lt.s32.totalorder %s10, 2
    // Predicated region
    $region17: #{double_conv.4} parent=5 // pred_check
      %p128 = pneg %p127
    $region18: #{double_conv.4} parent=5 // pred_check_branch
      %130 = sbr.rel (%p128) target = $region20
    $region19: #{double_conv.4} parent=5 // pred_region
      // Predicated region
      $region21: #{double_conv.4} parent=19 // pred_check
        %p131 = pneg %p30
      $region22: #{double_conv.4} parent=19 // pred_check_branch
        %133 = sbr.rel (%p131) target = $region24
      $region23: #{double_conv.4} parent=19 // pred_region
        %s134 = smul.u32 32, %s10
        %p135 = scmp.lt.s32.totalorder %s134, 63
        %s136 = scalar_select %p135, %s134, 63
        %s137 = smul.addr %s136, 4
        %s138 = scalar_lea.vmem %s0, %s137
        %s139 = smul.u32 32, %s10
      $region24: #{double_conv.4} parent=19 // pred_fallthru
        _
    $region20: #{double_conv.4} parent=5 // pred_fallthru
      _
    %p140 = scmp.le.s32.totalorder 1, %s10
    %p141 = scmp.lt.s32.totalorder %s10, 3
    %p142 = pnand %p140, %p141
    %p143 = pneg %p142
    // Predicated region
    $region25: #{double_conv.4} parent=5 // pred_check
      _
    $region26: #{double_conv.4} parent=5 // pred_check_branch
      %145 = sbr.rel (%p142) target = $region28
    $region27: #{double_conv.4} parent=5 // pred_region
      %s146 = ssub.s32 %s10, 1
      %s147 = smul.u32 32, %s15
      %p148 = scmp.lt.s32.totalorder %s147, 63
      %s149 = scalar_select %p148, %s147, 63
      %s150 = smul.addr %s149, 4
      %s151 = scalar_lea.vmem %s0, %s150
      %p152 = pneg %p36
      %p153 = pneg %p33
      %p154 = pneg %p57
      %p155 = pneg %p54
      %p156 = pneg %p83
      %p157 = pneg %p80
      %s158 = smul.u32 32, %s15
      %p159 = scmp.lt.s32.totalorder %s158, 63
      %s160 = scalar_select %p159, %s158, 63
      %s161 = smul.addr %s160, 4
      %s162 = scalar_lea.vmem %s2, %s161
      %p163 = pneg %p109
      %p164 = pneg %p106
      %p165 = scmp.lt.s32.totalorder %s15, 1
      %s166 = scalar_select %p165, %s15, 1
      %s167 = smul.addr %s166, 2
      %s168 = scalar_lea.vmem %s3, %s167
      %s169 = smul.u32 32, %s15
      %p170 = scmp.lt.s32.totalorder %s169, 63
      %s171 = scalar_select %p170, %s169, 63
      %s172 = smul.addr %s171, 4
      %s173 = scalar_lea.vmem %s0, %s172
      %s174 = smul.u32 32, %s15
      %s175 = smul.u32 32, %s15
      %p176 = scmp.lt.s32.totalorder %s175, 63
      %s177 = scalar_select %p176, %s175, 63
      %s178 = smul.addr %s177, 4
      %s179 = scalar_lea.vmem %s2, %s178
      %s180 = smul.u32 32, %s15
      %p181 = scmp.lt.s32.totalorder %s15, 1
      %s182 = scalar_select %p181, %s15, 1
      %s183 = smul.addr %s182, 2
      %s184 = scalar_lea.vmem %s3, %s183
      %v186 = vld [vmem:[%s173] sm:$0xf]
      %v187 = vld [vmem:[%s173 + $0x4] sm:$0xf]
      %v188 = vld [vmem:[%s173 + $0x8] sm:$0xf]
      %v189 = vld [vmem:[%s173 + $0xc] sm:$0xf]
      %v190 = vld [vmem:[%s173 + $0x10] sm:$0xf]
      %v191 = vld [vmem:[%s173 + $0x14] sm:$0xf]
      %v192 = vld [vmem:[%s173 + $0x18] sm:$0xf]
      %v193 = vld [vmem:[%s173 + $0x1c] sm:$0xf]
      %v194 = vld [vmem:[%s173 + $0x20] sm:$0xf]
      %v195 = vld [vmem:[%s173 + $0x24] sm:$0xf]
      %v196 = vld [vmem:[%s173 + $0x28] sm:$0xf]
      %v197 = vld [vmem:[%s173 + $0x2c] sm:$0xf]
      %v198 = vld [vmem:[%s173 + $0x30] sm:$0xf]
      %v199 = vld [vmem:[%s173 + $0x34] sm:$0xf]
      %v200 = vld [vmem:[%s173 + $0x38] sm:$0xf]
      %v201 = vld [vmem:[%s173 + $0x3c] sm:$0xf]
      %v202 = vld [vmem:[%s173 + $0x40] sm:$0xf]
      %v203 = vld [vmem:[%s173 + $0x44] sm:$0xf]
      %v204 = vld [vmem:[%s173 + $0x48] sm:$0xf]
      %v205 = vld [vmem:[%s173 + $0x4c] sm:$0xf]
      %v206 = vld [vmem:[%s173 + $0x50] sm:$0xf]
      %v207 = vld [vmem:[%s173 + $0x54] sm:$0xf]
      %v208 = vld [vmem:[%s173 + $0x58] sm:$0xf]
      %v209 = vld [vmem:[%s173 + $0x5c] sm:$0xf]
      %v210 = vld [vmem:[%s173 + $0x60] sm:$0xf]
      %v211 = vld [vmem:[%s173 + $0x64] sm:$0xf]
      %v212 = vld [vmem:[%s173 + $0x68] sm:$0xf]
      %v213 = vld [vmem:[%s173 + $0x6c] sm:$0xf]
      %v214 = vld [vmem:[%s173 + $0x70] sm:$0xf]
      %v215 = vld [vmem:[%s173 + $0x74] sm:$0xf]
      %v216 = vld [vmem:[%s173 + $0x78] sm:$0xf]
      %v217 = vld [vmem:[%s173 + $0x7c] sm:$0xf]
      %v218 = vld [vmem:[%s1] sm:$0xf]
      %v219 = vld [vmem:[%s1 + $0x4] sm:$0xf]
      %v220 = vld [vmem:[%s1 + $0x8] sm:$0xf]
      %v221 = vld [vmem:[%s1 + $0xc] sm:$0xf]
      %v222 = vld [vmem:[%s1 + $0x10] sm:$0xf]
      %v223 = vld [vmem:[%s1 + $0x14] sm:$0xf]
      %v224 = vld [vmem:[%s1 + $0x18] sm:$0xf]
      %v225 = vld [vmem:[%s1 + $0x1c] sm:$0xf]
      %v226 = vld [vmem:[%s1 + $0x20] sm:$0xf]
      %v227 = vld [vmem:[%s1 + $0x24] sm:$0xf]
      %v228 = vld [vmem:[%s1 + $0x28] sm:$0xf]
      %v229 = vld [vmem:[%s1 + $0x2c] sm:$0xf]
      %v230 = vld [vmem:[%s1 + $0x30] sm:$0xf]
      %v231 = vld [vmem:[%s1 + $0x34] sm:$0xf]
      %v232 = vld [vmem:[%s1 + $0x38] sm:$0xf]
      %v233 = vld [vmem:[%s1 + $0x3c] sm:$0xf]
      %v266 = vunpack.c.l.b16 %v186
      %v267 = vunpack.c.l.b16 %v187
      %v268 = vunpack.c.l.b16 %v188
      %v269 = vunpack.c.l.b16 %v189
      %v270 = vunpack.c.l.b16 %v190
      %v271 = vunpack.c.l.b16 %v191
      %v272 = vunpack.c.l.b16 %v192
      %v273 = vunpack.c.l.b16 %v193
      %v274 = vunpack.c.l.b16 %v194
      %v275 = vunpack.c.l.b16 %v195
      %v276 = vunpack.c.l.b16 %v196
      %v277 = vunpack.c.l.b16 %v197
      %v278 = vunpack.c.l.b16 %v198
      %v279 = vunpack.c.l.b16 %v199
      %v280 = vunpack.c.l.b16 %v200
      %v281 = vunpack.c.l.b16 %v201
      %v282 = vunpack.c.l.b16 %v202
      %v283 = vunpack.c.l.b16 %v203
      %v284 = vunpack.c.l.b16 %v204
      %v285 = vunpack.c.l.b16 %v205
      %v286 = vunpack.c.l.b16 %v206
      %v287 = vunpack.c.l.b16 %v207
      %v288 = vunpack.c.l.b16 %v208
      %v289 = vunpack.c.l.b16 %v209
      %v290 = vunpack.c.l.b16 %v210
      %v291 = vunpack.c.l.b16 %v211
      %v292 = vunpack.c.l.b16 %v212
      %v293 = vunpack.c.l.b16 %v213
      %v294 = vunpack.c.l.b16 %v214
      %v295 = vunpack.c.l.b16 %v215
      %v296 = vunpack.c.l.b16 %v216
      %v297 = vunpack.c.l.b16 %v217
      %v298 = vpack.c.b16 %v267, %v266
      %v299 = vpack.c.b16 %v269, %v268
      %v300 = vpack.c.b16 %v271, %v270
      %v301 = vpack.c.b16 %v273, %v272
      %v302 = vpack.c.b16 %v275, %v274
      %v303 = vpack.c.b16 %v277, %v276
      %v304 = vpack.c.b16 %v279, %v278
      %v305 = vpack.c.b16 %v281, %v280
      %v306 = vpack.c.b16 %v283, %v282
      %v307 = vpack.c.b16 %v285, %v284
      %v308 = vpack.c.b16 %v287, %v286
      %v309 = vpack.c.b16 %v289, %v288
      %v310 = vpack.c.b16 %v291, %v290
      %v311 = vpack.c.b16 %v293, %v292
      %v312 = vpack.c.b16 %v295, %v294
      %v313 = vpack.c.b16 %v297, %v296
      %v346 = vunpack.c.l.b16 %v218
      %v347 = vunpack.c.l.b16 %v219
      %v348 = vunpack.c.l.b16 %v220
      %v349 = vunpack.c.l.b16 %v221
      %v350 = vunpack.c.l.b16 %v222
      %v351 = vunpack.c.l.b16 %v223
      %v352 = vunpack.c.l.b16 %v224
      %v353 = vunpack.c.l.b16 %v225
      %v354 = vunpack.c.l.b16 %v226
      %v355 = vunpack.c.l.b16 %v227
      %v356 = vunpack.c.l.b16 %v228
      %v357 = vunpack.c.l.b16 %v229
      %v358 = vunpack.c.l.b16 %v230
      %v359 = vunpack.c.l.b16 %v231
      %v360 = vunpack.c.l.b16 %v232
      %v361 = vunpack.c.l.b16 %v233
      %v362 = vpack.c.b16 %v347, %v346
      %v363 = vpack.c.b16 %v349, %v348
      %v364 = vpack.c.b16 %v351, %v350
      %v365 = vpack.c.b16 %v353, %v352
      %v366 = vpack.c.b16 %v355, %v354
      %v367 = vpack.c.b16 %v357, %v356
      %v368 = vpack.c.b16 %v359, %v358
      %v369 = vpack.c.b16 %v361, %v360
      %378 = vmatprep.subr.bf16.mxu0 0
      %379 = vmatpush1.bf16.msra.mxu0 %v369
      %380 = vmatprep.subr.bf16.mxu0 0
      %381 = vmatpush1.bf16.msra.mxu0 %v368
      %382 = vmatprep.subr.bf16.mxu0 0
      %383 = vmatpush1.bf16.msra.mxu0 %v367
      %384 = vmatprep.subr.bf16.mxu0 0
      %385 = vmatpush1.bf16.msra.mxu0 %v366
      %386 = vmatprep.subr.bf16.mxu0 0
      %387 = vmatpush1.bf16.msra.mxu0 %v365
      %388 = vmatprep.subr.bf16.mxu0 0
      %389 = vmatpush1.bf16.msra.mxu0 %v364
      %390 = vmatprep.subr.bf16.mxu0 0
      %391 = vmatpush1.bf16.msra.mxu0 %v363
      %392 = vmatprep.subr.bf16.mxu0 0
      %393 = vmatpush1.bf16.msra.mxu0 %v362
      %394 = vmatprep.subr.bf16.mxu0 0
      %395 = vmatpush2.bf16.msra.mxu0 0
      %396 = vmatprep.subr.bf16.mxu0 0
      %397 = vmatpush2.bf16.msra.mxu0 0
      %398 = vmatprep.subr.bf16.mxu0 0
      %399 = vmatpush2.bf16.msra.mxu0 0
      %400 = vmatprep.subr.bf16.mxu0 0
      %401 = vmatpush2.bf16.msra.mxu0 0
      %402 = vmatprep.subr.bf16.mxu0 0
      %403 = vmatpush2.bf16.msra.mxu0 0
      %404 = vmatprep.subr.bf16.mxu0 0
      %405 = vmatpush2.bf16.msra.mxu0 0
      %406 = vmatprep.subr.bf16.mxu0 0
      %407 = vmatpush2.bf16.msra.mxu0 0
      %408 = vmatprep.subr.bf16.mxu0 0
      %409 = vmatpush2.bf16.msra.mxu0 0
      %410 = vmatprep.mubr.bf16.mxu0 0
      %411 = vmatmul.mubr.bf16.gmra.mxu0 %v298
      %v412 = vpop.f32.mrf.mxu0
      %v413 = vadd.f32 0.0, %v412
      %v414 = vpop.f32.mrf.mxu0
      %v415 = vpop.f32.mrf.mxu0
      %v416 = vadd.f32 0.0, %v415
      %v417 = vpop.f32.mrf.mxu0
      %418 = vmatprep.mubr.bf16.mxu0 0
      %419 = vmatmul.mubr.bf16.gmra.mxu0 %v299
      %v420 = vpop.f32.mrf.mxu0
      %v421 = vadd.f32 0.0, %v420
      %v422 = vpop.f32.mrf.mxu0
      %v423 = vpop.f32.mrf.mxu0
      %v424 = vadd.f32 0.0, %v423
      %v425 = vpop.f32.mrf.mxu0
      %426 = vmatprep.mubr.bf16.mxu0 0
      %427 = vmatmul.mubr.bf16.gmra.mxu0 %v300
      %v428 = vpop.f32.mrf.mxu0
      %v429 = vadd.f32 0.0, %v428
      %v430 = vpop.f32.mrf.mxu0
      %v431 = vpop.f32.mrf.mxu0
      %v432 = vadd.f32 0.0, %v431
      %v433 = vpop.f32.mrf.mxu0
      %434 = vmatprep.mubr.bf16.mxu0 0
      %435 = vmatmul.mubr.bf16.gmra.mxu0 %v301
      %v436 = vpop.f32.mrf.mxu0
      %v437 = vadd.f32 0.0, %v436
      %v438 = vpop.f32.mrf.mxu0
      %v439 = vpop.f32.mrf.mxu0
      %v440 = vadd.f32 0.0, %v439
      %v441 = vpop.f32.mrf.mxu0
      %442 = vmatprep.mubr.bf16.mxu0 0
      %443 = vmatmul.mubr.bf16.gmra.mxu0 %v302
      %v444 = vpop.f32.mrf.mxu0
      %v445 = vadd.f32 0.0, %v444
      %v446 = vpop.f32.mrf.mxu0
      %v447 = vpop.f32.mrf.mxu0
      %v448 = vadd.f32 0.0, %v447
      %v449 = vpop.f32.mrf.mxu0
      %450 = vmatprep.mubr.bf16.mxu0 0
      %451 = vmatmul.mubr.bf16.gmra.mxu0 %v303
      %v452 = vpop.f32.mrf.mxu0
      %v453 = vadd.f32 0.0, %v452
      %v454 = vpop.f32.mrf.mxu0
      %v455 = vpop.f32.mrf.mxu0
      %v456 = vadd.f32 0.0, %v455
      %v457 = vpop.f32.mrf.mxu0
      %458 = vmatprep.mubr.bf16.mxu0 0
      %459 = vmatmul.mubr.bf16.gmra.mxu0 %v304
      %v460 = vpop.f32.mrf.mxu0
      %v461 = vadd.f32 0.0, %v460
      %v462 = vpop.f32.mrf.mxu0
      %v463 = vpop.f32.mrf.mxu0
      %v464 = vadd.f32 0.0, %v463
      %v465 = vpop.f32.mrf.mxu0
      %466 = vmatprep.mubr.bf16.mxu0 0
      %467 = vmatmul.mubr.bf16.gmra.mxu0 %v305
      %v468 = vpop.f32.mrf.mxu0
      %v469 = vadd.f32 0.0, %v468
      %v470 = vpop.f32.mrf.mxu0
      %v471 = vpop.f32.mrf.mxu0
      %v472 = vadd.f32 0.0, %v471
      %v473 = vpop.f32.mrf.mxu0
      %474 = vmatprep.mubr.bf16.mxu0 0
      %475 = vmatmul.mubr.bf16.gmra.mxu0 %v306
      %v476 = vpop.f32.mrf.mxu0
      %v477 = vadd.f32 0.0, %v476
      %v478 = vpop.f32.mrf.mxu0
      %v479 = vpop.f32.mrf.mxu0
      %v480 = vadd.f32 0.0, %v479
      %v481 = vpop.f32.mrf.mxu0
      %482 = vmatprep.mubr.bf16.mxu0 0
      %483 = vmatmul.mubr.bf16.gmra.mxu0 %v307
      %v484 = vpop.f32.mrf.mxu0
      %v485 = vadd.f32 0.0, %v484
      %v486 = vpop.f32.mrf.mxu0
      %v487 = vpop.f32.mrf.mxu0
      %v488 = vadd.f32 0.0, %v487
      %v489 = vpop.f32.mrf.mxu0
      %490 = vmatprep.mubr.bf16.mxu0 0
      %491 = vmatmul.mubr.bf16.gmra.mxu0 %v308
      %v492 = vpop.f32.mrf.mxu0
      %v493 = vadd.f32 0.0, %v492
      %v494 = vpop.f32.mrf.mxu0
      %v495 = vpop.f32.mrf.mxu0
      %v496 = vadd.f32 0.0, %v495
      %v497 = vpop.f32.mrf.mxu0
      %498 = vmatprep.mubr.bf16.mxu0 0
      %499 = vmatmul.mubr.bf16.gmra.mxu0 %v309
      %v500 = vpop.f32.mrf.mxu0
      %v501 = vadd.f32 0.0, %v500
      %v502 = vpop.f32.mrf.mxu0
      %v503 = vpop.f32.mrf.mxu0
      %v504 = vadd.f32 0.0, %v503
      %v505 = vpop.f32.mrf.mxu0
      %506 = vmatprep.mubr.bf16.mxu0 0
      %507 = vmatmul.mubr.bf16.gmra.mxu0 %v310
      %v508 = vpop.f32.mrf.mxu0
      %v509 = vadd.f32 0.0, %v508
      %v510 = vpop.f32.mrf.mxu0
      %v511 = vpop.f32.mrf.mxu0
      %v512 = vadd.f32 0.0, %v511
      %v513 = vpop.f32.mrf.mxu0
      %514 = vmatprep.mubr.bf16.mxu0 0
      %515 = vmatmul.mubr.bf16.gmra.mxu0 %v311
      %v516 = vpop.f32.mrf.mxu0
      %v517 = vadd.f32 0.0, %v516
      %v518 = vpop.f32.mrf.mxu0
      %v519 = vpop.f32.mrf.mxu0
      %v520 = vadd.f32 0.0, %v519
      %v521 = vpop.f32.mrf.mxu0
      %522 = vmatprep.mubr.bf16.mxu0 0
      %523 = vmatmul.mubr.bf16.gmra.mxu0 %v312
      %v524 = vpop.f32.mrf.mxu0
      %v525 = vadd.f32 0.0, %v524
      %v526 = vpop.f32.mrf.mxu0
      %v527 = vpop.f32.mrf.mxu0
      %v528 = vadd.f32 0.0, %v527
      %v529 = vpop.f32.mrf.mxu0
      %530 = vmatprep.mubr.bf16.mxu0 0
      %531 = vmatmul.mubr.bf16.gmra.mxu0 %v313
      %v532 = vpop.f32.mrf.mxu0
      %v533 = vadd.f32 0.0, %v532
      %v534 = vpop.f32.mrf.mxu0
      %v535 = vpop.f32.mrf.mxu0
      %v536 = vadd.f32 0.0, %v535
      %v537 = vpop.f32.mrf.mxu0
      %538 = vdwg.mxu0
      %v539 = vpack.c.bf16 %v416, %v413
      %v540 = vpack.c.bf16 %v424, %v421
      %v541 = vpack.c.bf16 %v432, %v429
      %v542 = vpack.c.bf16 %v440, %v437
      %v543 = vpack.c.bf16 %v448, %v445
      %v544 = vpack.c.bf16 %v456, %v453
      %v545 = vpack.c.bf16 %v464, %v461
      %v546 = vpack.c.bf16 %v472, %v469
      %v547 = vpack.c.bf16 %v480, %v477
      %v548 = vpack.c.bf16 %v488, %v485
      %v549 = vpack.c.bf16 %v496, %v493
      %v550 = vpack.c.bf16 %v504, %v501
      %v551 = vpack.c.bf16 %v512, %v509
      %v552 = vpack.c.bf16 %v520, %v517
      %v553 = vpack.c.bf16 %v528, %v525
      %v554 = vpack.c.bf16 %v536, %v533
      %v571 = vunpack.c.l.b16 %v539
      %v572 = vunpack.c.h.b16 %v539
      %v573 = vunpack.c.l.b16 %v540
      %v574 = vunpack.c.h.b16 %v540
      %v575 = vunpack.c.l.b16 %v541
      %v576 = vunpack.c.h.b16 %v541
      %v577 = vunpack.c.l.b16 %v542
      %v578 = vunpack.c.h.b16 %v542
      %v579 = vunpack.c.l.b16 %v543
      %v580 = vunpack.c.h.b16 %v543
      %v581 = vunpack.c.l.b16 %v544
      %v582 = vunpack.c.h.b16 %v544
      %v583 = vunpack.c.l.b16 %v545
      %v584 = vunpack.c.h.b16 %v545
      %v585 = vunpack.c.l.b16 %v546
      %v586 = vunpack.c.h.b16 %v546
      %v587 = vunpack.c.l.b16 %v547
      %v588 = vunpack.c.h.b16 %v547
      %v589 = vunpack.c.l.b16 %v548
      %v590 = vunpack.c.h.b16 %v548
      %v591 = vunpack.c.l.b16 %v549
      %v592 = vunpack.c.h.b16 %v549
      %v593 = vunpack.c.l.b16 %v550
      %v594 = vunpack.c.h.b16 %v550
      %v595 = vunpack.c.l.b16 %v551
      %v596 = vunpack.c.h.b16 %v551
      %v597 = vunpack.c.l.b16 %v552
      %v598 = vunpack.c.h.b16 %v552
      %v599 = vunpack.c.l.b16 %v553
      %v600 = vunpack.c.h.b16 %v553
      %v601 = vunpack.c.l.b16 %v554
      %v602 = vunpack.c.h.b16 %v554
      %v603 = vpack.c.b16 %v571, %v571
      %v604 = vpack.c.b16 %v572, %v572
      %v605 = vpack.c.b16 %v573, %v573
      %v606 = vpack.c.b16 %v574, %v574
      %v607 = vpack.c.b16 %v575, %v575
      %v608 = vpack.c.b16 %v576, %v576
      %v609 = vpack.c.b16 %v577, %v577
      %v610 = vpack.c.b16 %v578, %v578
      %v611 = vpack.c.b16 %v579, %v579
      %v612 = vpack.c.b16 %v580, %v580
      %v613 = vpack.c.b16 %v581, %v581
      %v614 = vpack.c.b16 %v582, %v582
      %v615 = vpack.c.b16 %v583, %v583
      %v616 = vpack.c.b16 %v584, %v584
      %v617 = vpack.c.b16 %v585, %v585
      %v618 = vpack.c.b16 %v586, %v586
      %v619 = vpack.c.b16 %v587, %v587
      %v620 = vpack.c.b16 %v588, %v588
      %v621 = vpack.c.b16 %v589, %v589
      %v622 = vpack.c.b16 %v590, %v590
      %v623 = vpack.c.b16 %v591, %v591
      %v624 = vpack.c.b16 %v592, %v592
      %v625 = vpack.c.b16 %v593, %v593
      %v626 = vpack.c.b16 %v594, %v594
      %v627 = vpack.c.b16 %v595, %v595
      %v628 = vpack.c.b16 %v596, %v596
      %v629 = vpack.c.b16 %v597, %v597
      %v630 = vpack.c.b16 %v598, %v598
      %v631 = vpack.c.b16 %v599, %v599
      %v632 = vpack.c.b16 %v600, %v600
      %v633 = vpack.c.b16 %v601, %v601
      %v634 = vpack.c.b16 %v602, %v602
      %667 = vst [vmem:[%s179] sm:$0xf] %v603
      %668 = vst [vmem:[%s179 + $0x4] sm:$0xf] %v604
      %669 = vst [vmem:[%s179 + $0x8] sm:$0xf] %v605
      %670 = vst [vmem:[%s179 + $0xc] sm:$0xf] %v606
      %671 = vst [vmem:[%s179 + $0x10] sm:$0xf] %v607
      %672 = vst [vmem:[%s179 + $0x14] sm:$0xf] %v608
      %673 = vst [vmem:[%s179 + $0x18] sm:$0xf] %v609
      %674 = vst [vmem:[%s179 + $0x1c] sm:$0xf] %v610
      %675 = vst [vmem:[%s179 + $0x20] sm:$0xf] %v611
      %676 = vst [vmem:[%s179 + $0x24] sm:$0xf] %v612
      %677 = vst [vmem:[%s179 + $0x28] sm:$0xf] %v613
      %678 = vst [vmem:[%s179 + $0x2c] sm:$0xf] %v614
      %679 = vst [vmem:[%s179 + $0x30] sm:$0xf] %v615
      %680 = vst [vmem:[%s179 + $0x34] sm:$0xf] %v616
      %681 = vst [vmem:[%s179 + $0x38] sm:$0xf] %v617
      %682 = vst [vmem:[%s179 + $0x3c] sm:$0xf] %v618
      %683 = vst [vmem:[%s179 + $0x40] sm:$0xf] %v619
      %684 = vst [vmem:[%s179 + $0x44] sm:$0xf] %v620
      %685 = vst [vmem:[%s179 + $0x48] sm:$0xf] %v621
      %686 = vst [vmem:[%s179 + $0x4c] sm:$0xf] %v622
      %687 = vst [vmem:[%s179 + $0x50] sm:$0xf] %v623
      %688 = vst [vmem:[%s179 + $0x54] sm:$0xf] %v624
      %689 = vst [vmem:[%s179 + $0x58] sm:$0xf] %v625
      %690 = vst [vmem:[%s179 + $0x5c] sm:$0xf] %v626
      %691 = vst [vmem:[%s179 + $0x60] sm:$0xf] %v627
      %692 = vst [vmem:[%s179 + $0x64] sm:$0xf] %v628
      %693 = vst [vmem:[%s179 + $0x68] sm:$0xf] %v629
      %694 = vst [vmem:[%s179 + $0x6c] sm:$0xf] %v630
      %695 = vst [vmem:[%s179 + $0x70] sm:$0xf] %v631
      %696 = vst [vmem:[%s179 + $0x74] sm:$0xf] %v632
      %697 = vst [vmem:[%s179 + $0x78] sm:$0xf] %v633
      %698 = vst [vmem:[%s179 + $0x7c] sm:$0xf] %v634
      %v699 = vadd.f32 %v413, %v416
      %v700 = vadd.f32 %v699, %v421
      %v701 = vadd.f32 %v700, %v424
      %v702 = vadd.f32 %v701, %v429
      %v703 = vadd.f32 %v702, %v432
      %v704 = vadd.f32 %v703, %v437
      %v705 = vadd.f32 %v704, %v440
      %v706 = vadd.f32 %v705, %v445
      %v707 = vadd.f32 %v706, %v448
      %v708 = vadd.f32 %v707, %v453
      %v709 = vadd.f32 %v708, %v456
      %v710 = vadd.f32 %v709, %v461
      %v711 = vadd.f32 %v710, %v464
      %v712 = vadd.f32 %v711, %v469
      %v713 = vadd.f32 %v712, %v472
      %v714 = vadd.f32 %v713, %v477
      %v715 = vadd.f32 %v714, %v480
      %v716 = vadd.f32 %v715, %v485
      %v717 = vadd.f32 %v716, %v488
      %v718 = vadd.f32 %v717, %v493
      %v719 = vadd.f32 %v718, %v496
      %v720 = vadd.f32 %v719, %v501
      %v721 = vadd.f32 %v720, %v504
      %v722 = vadd.f32 %v721, %v509
      %v723 = vadd.f32 %v722, %v512
      %v724 = vadd.f32 %v723, %v517
      %v725 = vadd.f32 %v724, %v520
      %v726 = vadd.f32 %v725, %v525
      %v727 = vadd.f32 %v726, %v528
      %v728 = vadd.f32 %v727, %v533
      %v729 = vadd.f32 %v728, %v536
      %v730 = vrot.slane %v729, 4
      %v731 = vadd.f32 %v729, %v730
      %v732 = vrot.slane %v731, 2
      %v733 = vadd.f32 %v731, %v732
      %v734 = vrot.slane %v733, 1
      %v735 = vadd.f32 %v733, %v734
      %736 = vst [vmem:[%s184] sm:$0x1] %v735
      %v737 = vmul.f32 %v413, %v413
      %v738 = vmul.f32 %v416, %v416
      %v739 = vmul.f32 %v421, %v421
      %v740 = vmul.f32 %v424, %v424
      %v741 = vmul.f32 %v429, %v429
      %v742 = vmul.f32 %v432, %v432
      %v743 = vmul.f32 %v437, %v437
      %v744 = vmul.f32 %v440, %v440
      %v745 = vmul.f32 %v445, %v445
      %v746 = vmul.f32 %v448, %v448
      %v747 = vmul.f32 %v453, %v453
      %v748 = vmul.f32 %v456, %v456
      %v749 = vmul.f32 %v461, %v461
      %v750 = vmul.f32 %v464, %v464
      %v751 = vmul.f32 %v469, %v469
      %v752 = vmul.f32 %v472, %v472
      %v753 = vmul.f32 %v477, %v477
      %v754 = vmul.f32 %v480, %v480
      %v755 = vmul.f32 %v485, %v485
      %v756 = vmul.f32 %v488, %v488
      %v757 = vmul.f32 %v493, %v493
      %v758 = vmul.f32 %v496, %v496
      %v759 = vmul.f32 %v501, %v501
      %v760 = vmul.f32 %v504, %v504
      %v761 = vmul.f32 %v509, %v509
      %v762 = vmul.f32 %v512, %v512
      %v763 = vmul.f32 %v517, %v517
      %v764 = vmul.f32 %v520, %v520
      %v765 = vmul.f32 %v525, %v525
      %v766 = vmul.f32 %v528, %v528
      %v767 = vmul.f32 %v533, %v533
      %v768 = vmul.f32 %v536, %v536
      %v769 = vadd.f32 %v737, %v738
      %v770 = vadd.f32 %v769, %v739
      %v771 = vadd.f32 %v770, %v740
      %v772 = vadd.f32 %v771, %v741
      %v773 = vadd.f32 %v772, %v742
      %v774 = vadd.f32 %v773, %v743
      %v775 = vadd.f32 %v774, %v744
      %v776 = vadd.f32 %v775, %v745
      %v777 = vadd.f32 %v776, %v746
      %v778 = vadd.f32 %v777, %v747
      %v779 = vadd.f32 %v778, %v748
      %v780 = vadd.f32 %v779, %v749
      %v781 = vadd.f32 %v780, %v750
      %v782 = vadd.f32 %v781, %v751
      %v783 = vadd.f32 %v782, %v752
      %v784 = vadd.f32 %v783, %v753
      %v785 = vadd.f32 %v784, %v754
      %v786 = vadd.f32 %v785, %v755
      %v787 = vadd.f32 %v786, %v756
      %v788 = vadd.f32 %v787, %v757
      %v789 = vadd.f32 %v788, %v758
      %v790 = vadd.f32 %v789, %v759
      %v791 = vadd.f32 %v790, %v760
      %v792 = vadd.f32 %v791, %v761
      %v793 = vadd.f32 %v792, %v762
      %v794 = vadd.f32 %v793, %v763
      %v795 = vadd.f32 %v794, %v764
      %v796 = vadd.f32 %v795, %v765
      %v797 = vadd.f32 %v796, %v766
      %v798 = vadd.f32 %v797, %v767
      %v799 = vadd.f32 %v798, %v768
      %v800 = vrot.slane %v799, 4
      %v801 = vadd.f32 %v799, %v800
      %v802 = vrot.slane %v801, 2
      %v803 = vadd.f32 %v801, %v802
      %v804 = vrot.slane %v803, 1
      %v805 = vadd.f32 %v803, %v804
      %806 = vst [vmem:[%s184 + $0x1] sm:$0x1] %v805
      %s807 = smul.u32 32, %s15
      %p808 = scmp.lt.s32.totalorder %s807, 63
      %s809 = scalar_select %p808, %s807, 63
      %s810 = smul.addr %s809, 4
      %s811 = scalar_lea.vmem %s2, %s810
      %p812 = scmp.lt.s32.totalorder %s15, 1
      %s813 = scalar_select %p812, %s15, 1
      %s814 = smul.addr %s813, 2
      %s815 = scalar_lea.vmem %s3, %s814
      // Predicated region
      $region29: #{double_conv.4} parent=27 // pred_check
        %p816 = pneg %p80
      $region30: #{double_conv.4} parent=27 // pred_check_branch
        %818 = sbr.rel (%p816) target = $region32
      $region31: #{double_conv.4} parent=27 // pred_region
        %s819 = smul.u32 32, %s15
      $region32: #{double_conv.4} parent=27 // pred_fallthru
        _
      // Predicated region
      $region33: #{double_conv.4} parent=27 // pred_check
        %p820 = pneg %p106
      $region34: #{double_conv.4} parent=27 // pred_check_branch
        %822 = sbr.rel (%p820) target = $region36
      $region35: #{double_conv.4} parent=27 // pred_region
        _
      $region36: #{double_conv.4} parent=27 // pred_fallthru
        _
    $region28: #{double_conv.4} parent=5 // pred_fallthru
      _
    %p823 = scmp.le.s32.totalorder 2, %s10
    // Predicated region
    $region37: #{double_conv.4} parent=5 // pred_check
      %p824 = pneg %p823
    $region38: #{double_conv.4} parent=5 // pred_check_branch
      %826 = sbr.rel (%p824) target = $region40
    $region39: #{double_conv.4} parent=5 // pred_region
      %s827 = ssub.s32 %s10, 2
      // Predicated region
      $region41: #{double_conv.4} parent=39 // pred_check
        %p828 = pneg %p86
      $region42: #{double_conv.4} parent=39 // pred_check_branch
        %830 = sbr.rel (%p828) target = $region44
      $region43: #{double_conv.4} parent=39 // pred_region
        %s831 = smul.u32 32, %s16
        %p832 = scmp.lt.s32.totalorder %s831, 63
        %s833 = scalar_select %p832, %s831, 63
        %s834 = smul.addr %s833, 4
        %s835 = scalar_lea.vmem %s2, %s834
      $region44: #{double_conv.4} parent=39 // pred_fallthru
        _
      // Predicated region
      $region45: #{double_conv.4} parent=39 // pred_check
        %p836 = pneg %p112
      $region46: #{double_conv.4} parent=39 // pred_check_branch
        %838 = sbr.rel (%p836) target = $region48
      $region47: #{double_conv.4} parent=39 // pred_region
        %p839 = scmp.lt.s32.totalorder %s16, 1
        %s840 = scalar_select %p839, %s16, 1
        %s841 = smul.addr %s840, 2
        %s842 = scalar_lea.vmem %s3, %s841
      $region48: #{double_conv.4} parent=39 // pred_fallthru
        _
    $region40: #{double_conv.4} parent=5 // pred_fallthru
      _
  $region6: #{double_conv.4} parent=0 // loop_footer
    %s14 = sadd.s32 1, %s10
  $region7: #{double_conv.4} parent=0 // loop_footer_branch
    %9 = sbr.rel target = $region3
  $region8: #{double_conv.4} parent=0 // loop_exit
    _

// kernel: double_conv.5
$region0: #{double_conv.5}
  #allocation0 [shape = 'u32[]', space=smem, size = 0x4, offset = 0x4, fixed_abs, tag = 'smem constant byte address 0x4 - core index']
  #allocation1 [shape = 'u32[144,128]{1,0:T(1,128)}', space=vmem, size = 0x12000, scoped, tag = 'internal scratch']
  %s0 = inlined_call_operand.vmem [shape: bf16[512,128], index: 0, kind: input, shape index: {}]
  %s1 = inlined_call_operand.vmem [shape: f32[1,128], index: 1, kind: input, shape index: {}]
  %s2 = inlined_call_operand.vmem [shape: f32[1,128], index: 2, kind: input, shape index: {}]
  %s3 = inlined_call_operand.vmem [shape: bf16[512,8], index: 3, kind: output, shape index: {}]
  %s4 = sld [smem:[#allocation0]]
  $region45: #{double_conv.5} parent=0
    _
  %s6 = ssub.s32 1, %s4
  %s7 = scalar_select 0, %s6, %s4
  loop: start=0, step=1, limit=4
  $region2: #{double_conv.5} parent=0 // loop_pre_header
    _
  $region3: #{double_conv.5} parent=0 // loop_header
    %s9 = sphi 0, %s13
    %p10 = scmp.ge.s32.totalorder %s9, 4
    %s19 = sphi 0, %s21
    %s22 = sphi 0, %s19
    %s23 = sphi 0, %s22
    %s39 = sphi 0, %s23
    %s43 = sphi 0, %s43
    %s45 = sphi 0, %s43
    %s46 = sphi 0, %s45
    %s60 = sphi 0, %s46
    %s64 = sphi 0, %s64
    %s66 = sphi 0, %s64
    %s67 = sphi 0, %s66
    %s81 = sphi 0, %s67
    %s87 = sphi 0, %s89
    %s90 = sphi 0, %s87
    %s91 = sphi 0, %s90
    %s107 = sphi 0, %s91
  $region4: #{double_conv.5} parent=0 // loop_header_branch
    %12 = sbr.rel (%p10) target = $region8
  $region5: #{double_conv.5} parent=0 // loop_body
    %s14 = ssub.s32 %s9, 1
    %s15 = ssub.s32 %s9, 2
    %s16 = sadd.s32 %s9, 1
    %s17 = ssub.s32 %s9, %s16
    %p18 = scmp.eq.s32.totalorder %s17, 0
    %s20 = sadd.s32 %s19, 1
    %s21 = scalar_select %p18, %s19, %s20
    %p24 = pneg %p18
    %p25 = scmp.eq.s32.totalorder %s9, 1
    %p26 = por %p24, %p25
    %p27 = scmp.ne.s32.totalorder %s19, %s22
    %p28 = scmp.eq.s32.totalorder %s9, 0
    %p29 = por %p27, %p28
    %p30 = scmp.ne.s32.totalorder %s19, %s22
    %p31 = scmp.eq.s32.totalorder %s14, 1
    %p32 = por %p30, %p31
    %p33 = scmp.ne.s32.totalorder %s22, %s23
    %p34 = scmp.eq.s32.totalorder %s14, 0
    %p35 = por %p33, %p34
    %p36 = scmp.ne.s32.totalorder %s22, %s23
    %p37 = scmp.eq.s32.totalorder %s15, 1
    %p38 = por %p36, %p37
    %p40 = scmp.ne.s32.totalorder %s23, %s39
    %p41 = scmp.eq.s32.totalorder %s15, 0
    %p42 = por %p40, %p41
    %s44 = sadd.s32 %s43, 1
    %p47 = scmp.eq.s32.totalorder %s9, 1
    %p48 = scmp.ne.s32.totalorder %s43, %s45
    %p49 = scmp.eq.s32.totalorder %s9, 0
    %p50 = por %p48, %p49
    %p51 = scmp.ne.s32.totalorder %s43, %s45
    %p52 = scmp.eq.s32.totalorder %s14, 1
    %p53 = por %p51, %p52
    %p54 = scmp.ne.s32.totalorder %s45, %s46
    %p55 = scmp.eq.s32.totalorder %s14, 0
    %p56 = por %p54, %p55
    %p57 = scmp.ne.s32.totalorder %s45, %s46
    %p58 = scmp.eq.s32.totalorder %s15, 1
    %p59 = por %p57, %p58
    %p61 = scmp.ne.s32.totalorder %s46, %s60
    %p62 = scmp.eq.s32.totalorder %s15, 0
    %p63 = por %p61, %p62
    %s65 = sadd.s32 %s64, 1
    %p68 = scmp.eq.s32.totalorder %s9, 1
    %p69 = scmp.ne.s32.totalorder %s64, %s66
    %p70 = scmp.eq.s32.totalorder %s9, 0
    %p71 = por %p69, %p70
    %p72 = scmp.ne.s32.totalorder %s64, %s66
    %p73 = scmp.eq.s32.totalorder %s14, 1
    %p74 = por %p72, %p73
    %p75 = scmp.ne.s32.totalorder %s66, %s67
    %p76 = scmp.eq.s32.totalorder %s14, 0
    %p77 = por %p75, %p76
    %p78 = scmp.ne.s32.totalorder %s66, %s67
    %p79 = scmp.eq.s32.totalorder %s15, 1
    %p80 = por %p78, %p79
    %p82 = scmp.ne.s32.totalorder %s67, %s81
    %p83 = scmp.eq.s32.totalorder %s15, 0
    %p84 = por %p82, %p83
    %s85 = ssub.s32 %s9, %s16
    %p86 = scmp.eq.s32.totalorder %s85, 0
    %s88 = sadd.s32 %s87, 1
    %s89 = scalar_select %p86, %s87, %s88
    %p92 = pneg %p86
    %p93 = scmp.eq.s32.totalorder %s9, 1
    %p94 = por %p92, %p93
    %p95 = scmp.ne.s32.totalorder %s87, %s90
    %p96 = scmp.eq.s32.totalorder %s9, 0
    %p97 = por %p95, %p96
    %p98 = scmp.ne.s32.totalorder %s87, %s90
    %p99 = scmp.eq.s32.totalorder %s14, 1
    %p100 = por %p98, %p99
    %p101 = scmp.ne.s32.totalorder %s90, %s91
    %p102 = scmp.eq.s32.totalorder %s14, 0
    %p103 = por %p101, %p102
    %p104 = scmp.ne.s32.totalorder %s90, %s91
    %p105 = scmp.eq.s32.totalorder %s15, 1
    %p106 = por %p104, %p105
    %p108 = scmp.ne.s32.totalorder %s91, %s107
    %p109 = scmp.eq.s32.totalorder %s15, 0
    %p110 = por %p108, %p109
    %p111 = scmp.le.s32.totalorder 1, %s9
    %p112 = scmp.lt.s32.totalorder %s9, 3
    %p113 = pnand %p111, %p112
    %p114 = pneg %p113
    // Predicated region
    $region9: #{double_conv.5} parent=5 // pred_check
      _
    $region10: #{double_conv.5} parent=5 // pred_check_branch
      %116 = sbr.rel (%p113) target = $region12
    $region11: #{double_conv.5} parent=5 // pred_region
      %s117 = ssub.s32 %s9, 1
      // Predicated region
      $region13: #{double_conv.5} parent=11 // pred_check
        %p118 = pneg %p56
      $region14: #{double_conv.5} parent=11 // pred_check_branch
        %120 = sbr.rel (%p118) target = $region16
      $region15: #{double_conv.5} parent=11 // pred_region
        _
      $region16: #{double_conv.5} parent=11 // pred_fallthru
        _
      // Predicated region
      $region17: #{double_conv.5} parent=11 // pred_check
        %p121 = pneg %p77
      $region18: #{double_conv.5} parent=11 // pred_check_branch
        %123 = sbr.rel (%p121) target = $region20
      $region19: #{double_conv.5} parent=11 // pred_region
        _
      $region20: #{double_conv.5} parent=11 // pred_fallthru
        _
    $region12: #{double_conv.5} parent=5 // pred_fallthru
      _
    %p124 = scmp.lt.s32.totalorder %s9, 2
    // Predicated region
    $region21: #{double_conv.5} parent=5 // pred_check
      %p125 = pneg %p124
    $region22: #{double_conv.5} parent=5 // pred_check_branch
      %127 = sbr.rel (%p125) target = $region24
    $region23: #{double_conv.5} parent=5 // pred_region
      // Predicated region
      $region25: #{double_conv.5} parent=23 // pred_check
        %p128 = pneg %p29
      $region26: #{double_conv.5} parent=23 // pred_check_branch
        %130 = sbr.rel (%p128) target = $region28
      $region27: #{double_conv.5} parent=23 // pred_region
        %s131 = smul.u32 32, %s9
        %p132 = scmp.lt.s32.totalorder %s131, 63
        %s133 = scalar_select %p132, %s131, 63
        %s134 = smul.addr %s133, 4
        %s135 = scalar_lea.vmem %s0, %s134
        %s136 = smul.u32 32, %s9
      $region28: #{double_conv.5} parent=23 // pred_fallthru
        _
    $region24: #{double_conv.5} parent=5 // pred_fallthru
      _
    %p137 = scmp.le.s32.totalorder 1, %s9
    %p138 = scmp.lt.s32.totalorder %s9, 3
    %p139 = pnand %p137, %p138
    %p140 = pneg %p139
    // Predicated region
    $region29: #{double_conv.5} parent=5 // pred_check
      _
    $region30: #{double_conv.5} parent=5 // pred_check_branch
      %142 = sbr.rel (%p139) target = $region32
    $region31: #{double_conv.5} parent=5 // pred_region
      %s143 = ssub.s32 %s9, 1
      %s144 = smul.u32 32, %s14
      %p145 = scmp.lt.s32.totalorder %s144, 63
      %s146 = scalar_select %p145, %s144, 63
      %s147 = smul.addr %s146, 4
      %s148 = scalar_lea.vmem %s0, %s147
      %p149 = pneg %p35
      %p150 = pneg %p32
      %p151 = pneg %p56
      %p152 = pneg %p53
      %p153 = pneg %p77
      %p154 = pneg %p74
      %p155 = pneg %p103
      %p156 = pneg %p100
      %s157 = smul.u32 32, %s14
      %p158 = scmp.lt.s32.totalorder %s157, 63
      %s159 = scalar_select %p158, %s157, 63
      %s160 = smul.addr %s159, 4
      %s161 = scalar_lea.vmem %s3, %s160
      %s162 = smul.u32 32, %s14
      %p163 = scmp.lt.s32.totalorder %s162, 63
      %s164 = scalar_select %p163, %s162, 63
      %s165 = smul.addr %s164, 4
      %s166 = scalar_lea.vmem %s0, %s165
      %s167 = smul.u32 32, %s14
      %s168 = smul.u32 32, %s14
      %p169 = scmp.lt.s32.totalorder %s168, 63
      %s170 = scalar_select %p169, %s168, 63
      %s171 = smul.addr %s170, 4
      %s172 = scalar_lea.vmem %s3, %s171
      %s173 = smul.u32 32, %s14
      %v174 = vld [vmem:[%s166] sm:$0xf]
      %v175 = vld [vmem:[%s166 + $0x4] sm:$0xf]
      %v176 = vld [vmem:[%s166 + $0x8] sm:$0xf]
      %v177 = vld [vmem:[%s166 + $0xc] sm:$0xf]
      %v178 = vld [vmem:[%s166 + $0x10] sm:$0xf]
      %v179 = vld [vmem:[%s166 + $0x14] sm:$0xf]
      %v180 = vld [vmem:[%s166 + $0x18] sm:$0xf]
      %v181 = vld [vmem:[%s166 + $0x1c] sm:$0xf]
      %v182 = vld [vmem:[%s166 + $0x20] sm:$0xf]
      %v183 = vld [vmem:[%s166 + $0x24] sm:$0xf]
      %v184 = vld [vmem:[%s166 + $0x28] sm:$0xf]
      %v185 = vld [vmem:[%s166 + $0x2c] sm:$0xf]
      %v186 = vld [vmem:[%s166 + $0x30] sm:$0xf]
      %v187 = vld [vmem:[%s166 + $0x34] sm:$0xf]
      %v188 = vld [vmem:[%s166 + $0x38] sm:$0xf]
      %v189 = vld [vmem:[%s166 + $0x3c] sm:$0xf]
      %v190 = vld [vmem:[%s166 + $0x40] sm:$0xf]
      %v191 = vld [vmem:[%s166 + $0x44] sm:$0xf]
      %v192 = vld [vmem:[%s166 + $0x48] sm:$0xf]
      %v193 = vld [vmem:[%s166 + $0x4c] sm:$0xf]
      %v194 = vld [vmem:[%s166 + $0x50] sm:$0xf]
      %v195 = vld [vmem:[%s166 + $0x54] sm:$0xf]
      %v196 = vld [vmem:[%s166 + $0x58] sm:$0xf]
      %v197 = vld [vmem:[%s166 + $0x5c] sm:$0xf]
      %v198 = vld [vmem:[%s166 + $0x60] sm:$0xf]
      %v199 = vld [vmem:[%s166 + $0x64] sm:$0xf]
      %v200 = vld [vmem:[%s166 + $0x68] sm:$0xf]
      %v201 = vld [vmem:[%s166 + $0x6c] sm:$0xf]
      %v202 = vld [vmem:[%s166 + $0x70] sm:$0xf]
      %v203 = vld [vmem:[%s166 + $0x74] sm:$0xf]
      %v204 = vld [vmem:[%s166 + $0x78] sm:$0xf]
      %v205 = vld [vmem:[%s166 + $0x7c] sm:$0xf]
      %v206 = vunpack.c.l.bf16 %v174
      %v207 = vunpack.c.l.bf16 %v175
      %v208 = vunpack.c.l.bf16 %v176
      %v209 = vunpack.c.l.bf16 %v177
      %v210 = vunpack.c.l.bf16 %v178
      %v211 = vunpack.c.l.bf16 %v179
      %v212 = vunpack.c.l.bf16 %v180
      %v213 = vunpack.c.l.bf16 %v181
      %v214 = vunpack.c.l.bf16 %v182
      %v215 = vunpack.c.l.bf16 %v183
      %v216 = vunpack.c.l.bf16 %v184
      %v217 = vunpack.c.l.bf16 %v185
      %v218 = vunpack.c.l.bf16 %v186
      %v219 = vunpack.c.l.bf16 %v187
      %v220 = vunpack.c.l.bf16 %v188
      %v221 = vunpack.c.l.bf16 %v189
      %v222 = vunpack.c.l.bf16 %v190
      %v223 = vunpack.c.l.bf16 %v191
      %v224 = vunpack.c.l.bf16 %v192
      %v225 = vunpack.c.l.bf16 %v193
      %v226 = vunpack.c.l.bf16 %v194
      %v227 = vunpack.c.l.bf16 %v195
      %v228 = vunpack.c.l.bf16 %v196
      %v229 = vunpack.c.l.bf16 %v197
      %v230 = vunpack.c.l.bf16 %v198
      %v231 = vunpack.c.l.bf16 %v199
      %v232 = vunpack.c.l.bf16 %v200
      %v233 = vunpack.c.l.bf16 %v201
      %v234 = vunpack.c.l.bf16 %v202
      %v235 = vunpack.c.l.bf16 %v203
      %v236 = vunpack.c.l.bf16 %v204
      %v237 = vunpack.c.l.bf16 %v205
      %v238 = vld [vmem:[%s1] sm:$0x1]
      %v240 = vlaneseq
      %v241 = vshrl.u32 %v240, 7
      %v242 = vsub.s32 0, %v241
      %v243 = vrot.slane %v238, %v242
      %v245 = vmul.f32 %v206, %v243
      %v246 = vmul.f32 %v207, %v243
      %v247 = vmul.f32 %v208, %v243
      %v248 = vmul.f32 %v209, %v243
      %v249 = vmul.f32 %v210, %v243
      %v250 = vmul.f32 %v211, %v243
      %v251 = vmul.f32 %v212, %v243
      %v252 = vmul.f32 %v213, %v243
      %v253 = vmul.f32 %v214, %v243
      %v254 = vmul.f32 %v215, %v243
      %v255 = vmul.f32 %v216, %v243
      %v256 = vmul.f32 %v217, %v243
      %v257 = vmul.f32 %v218, %v243
      %v258 = vmul.f32 %v219, %v243
      %v259 = vmul.f32 %v220, %v243
      %v260 = vmul.f32 %v221, %v243
      %v261 = vmul.f32 %v222, %v243
      %v262 = vmul.f32 %v223, %v243
      %v263 = vmul.f32 %v224, %v243
      %v264 = vmul.f32 %v225, %v243
      %v265 = vmul.f32 %v226, %v243
      %v266 = vmul.f32 %v227, %v243
      %v267 = vmul.f32 %v228, %v243
      %v268 = vmul.f32 %v229, %v243
      %v269 = vmul.f32 %v230, %v243
      %v270 = vmul.f32 %v231, %v243
      %v271 = vmul.f32 %v232, %v243
      %v272 = vmul.f32 %v233, %v243
      %v273 = vmul.f32 %v234, %v243
      %v274 = vmul.f32 %v235, %v243
      %v275 = vmul.f32 %v236, %v243
      %v276 = vmul.f32 %v237, %v243
      %v277 = vld [vmem:[%s2] sm:$0x1]
      %v279 = vlaneseq
      %v280 = vshrl.u32 %v279, 7
      %v281 = vsub.s32 0, %v280
      %v282 = vrot.slane %v277, %v281
      %v284 = vadd.f32 %v245, %v282
      %v285 = vadd.f32 %v246, %v282
      %v286 = vadd.f32 %v247, %v282
      %v287 = vadd.f32 %v248, %v282
      %v288 = vadd.f32 %v249, %v282
      %v289 = vadd.f32 %v250, %v282
      %v290 = vadd.f32 %v251, %v282
      %v291 = vadd.f32 %v252, %v282
      %v292 = vadd.f32 %v253, %v282
      %v293 = vadd.f32 %v254, %v282
      %v294 = vadd.f32 %v255, %v282
      %v295 = vadd.f32 %v256, %v282
      %v296 = vadd.f32 %v257, %v282
      %v297 = vadd.f32 %v258, %v282
      %v298 = vadd.f32 %v259, %v282
      %v299 = vadd.f32 %v260, %v282
      %v300 = vadd.f32 %v261, %v282
      %v301 = vadd.f32 %v262, %v282
      %v302 = vadd.f32 %v263, %v282
      %v303 = vadd.f32 %v264, %v282
      %v304 = vadd.f32 %v265, %v282
      %v305 = vadd.f32 %v266, %v282
      %v306 = vadd.f32 %v267, %v282
      %v307 = vadd.f32 %v268, %v282
      %v308 = vadd.f32 %v269, %v282
      %v309 = vadd.f32 %v270, %v282
      %v310 = vadd.f32 %v271, %v282
      %v311 = vadd.f32 %v272, %v282
      %v312 = vadd.f32 %v273, %v282
      %v313 = vadd.f32 %v274, %v282
      %v314 = vadd.f32 %v275, %v282
      %v315 = vadd.f32 %v276, %v282
      %v316 = vmax.f32 %v284, 0.0
      %v317 = vmax.f32 %v285, 0.0
      %v318 = vmax.f32 %v286, 0.0
      %v319 = vmax.f32 %v287, 0.0
      %v320 = vmax.f32 %v288, 0.0
      %v321 = vmax.f32 %v289, 0.0
      %v322 = vmax.f32 %v290, 0.0
      %v323 = vmax.f32 %v291, 0.0
      %v324 = vmax.f32 %v292, 0.0
      %v325 = vmax.f32 %v293, 0.0
      %v326 = vmax.f32 %v294, 0.0
      %v327 = vmax.f32 %v295, 0.0
      %v328 = vmax.f32 %v296, 0.0
      %v329 = vmax.f32 %v297, 0.0
      %v330 = vmax.f32 %v298, 0.0
      %v331 = vmax.f32 %v299, 0.0
      %v332 = vmax.f32 %v300, 0.0
      %v333 = vmax.f32 %v301, 0.0
      %v334 = vmax.f32 %v302, 0.0
      %v335 = vmax.f32 %v303, 0.0
      %v336 = vmax.f32 %v304, 0.0
      %v337 = vmax.f32 %v305, 0.0
      %v338 = vmax.f32 %v306, 0.0
      %v339 = vmax.f32 %v307, 0.0
      %v340 = vmax.f32 %v308, 0.0
      %v341 = vmax.f32 %v309, 0.0
      %v342 = vmax.f32 %v310, 0.0
      %v343 = vmax.f32 %v311, 0.0
      %v344 = vmax.f32 %v312, 0.0
      %v345 = vmax.f32 %v313, 0.0
      %v346 = vmax.f32 %v314, 0.0
      %v347 = vmax.f32 %v315, 0.0
      %v348 = vpack.c.bf16 %v317, %v316
      %v349 = vpack.c.bf16 %v319, %v318
      %v350 = vpack.c.bf16 %v321, %v320
      %v351 = vpack.c.bf16 %v323, %v322
      %v352 = vpack.c.bf16 %v325, %v324
      %v353 = vpack.c.bf16 %v327, %v326
      %v354 = vpack.c.bf16 %v329, %v328
      %v355 = vpack.c.bf16 %v331, %v330
      %v356 = vpack.c.bf16 %v333, %v332
      %v357 = vpack.c.bf16 %v335, %v334
      %v358 = vpack.c.bf16 %v337, %v336
      %v359 = vpack.c.bf16 %v339, %v338
      %v360 = vpack.c.bf16 %v341, %v340
      %v361 = vpack.c.bf16 %v343, %v342
      %v362 = vpack.c.bf16 %v345, %v344
      %v363 = vpack.c.bf16 %v347, %v346
      %v380 = vunpack.c.l.b16 %v348
      %v381 = vunpack.c.h.b16 %v348
      %v382 = vunpack.c.l.b16 %v349
      %v383 = vunpack.c.h.b16 %v349
      %v384 = vunpack.c.l.b16 %v350
      %v385 = vunpack.c.h.b16 %v350
      %v386 = vunpack.c.l.b16 %v351
      %v387 = vunpack.c.h.b16 %v351
      %v388 = vunpack.c.l.b16 %v352
      %v389 = vunpack.c.h.b16 %v352
      %v390 = vunpack.c.l.b16 %v353
      %v391 = vunpack.c.h.b16 %v353
      %v392 = vunpack.c.l.b16 %v354
      %v393 = vunpack.c.h.b16 %v354
      %v394 = vunpack.c.l.b16 %v355
      %v395 = vunpack.c.h.b16 %v355
      %v396 = vunpack.c.l.b16 %v356
      %v397 = vunpack.c.h.b16 %v356
      %v398 = vunpack.c.l.b16 %v357
      %v399 = vunpack.c.h.b16 %v357
      %v400 = vunpack.c.l.b16 %v358
      %v401 = vunpack.c.h.b16 %v358
      %v402 = vunpack.c.l.b16 %v359
      %v403 = vunpack.c.h.b16 %v359
      %v404 = vunpack.c.l.b16 %v360
      %v405 = vunpack.c.h.b16 %v360
      %v406 = vunpack.c.l.b16 %v361
      %v407 = vunpack.c.h.b16 %v361
      %v408 = vunpack.c.l.b16 %v362
      %v409 = vunpack.c.h.b16 %v362
      %v410 = vunpack.c.l.b16 %v363
      %v411 = vunpack.c.h.b16 %v363
      %v412 = vpack.c.b16 %v380, %v380
      %v413 = vpack.c.b16 %v381, %v381
      %v414 = vpack.c.b16 %v382, %v382
      %v415 = vpack.c.b16 %v383, %v383
      %v416 = vpack.c.b16 %v384, %v384
      %v417 = vpack.c.b16 %v385, %v385
      %v418 = vpack.c.b16 %v386, %v386
      %v419 = vpack.c.b16 %v387, %v387
      %v420 = vpack.c.b16 %v388, %v388
      %v421 = vpack.c.b16 %v389, %v389
      %v422 = vpack.c.b16 %v390, %v390
      %v423 = vpack.c.b16 %v391, %v391
      %v424 = vpack.c.b16 %v392, %v392
      %v425 = vpack.c.b16 %v393, %v393
      %v426 = vpack.c.b16 %v394, %v394
      %v427 = vpack.c.b16 %v395, %v395
      %v428 = vpack.c.b16 %v396, %v396
      %v429 = vpack.c.b16 %v397, %v397
      %v430 = vpack.c.b16 %v398, %v398
      %v431 = vpack.c.b16 %v399, %v399
      %v432 = vpack.c.b16 %v400, %v400
      %v433 = vpack.c.b16 %v401, %v401
      %v434 = vpack.c.b16 %v402, %v402
      %v435 = vpack.c.b16 %v403, %v403
      %v436 = vpack.c.b16 %v404, %v404
      %v437 = vpack.c.b16 %v405, %v405
      %v438 = vpack.c.b16 %v406, %v406
      %v439 = vpack.c.b16 %v407, %v407
      %v440 = vpack.c.b16 %v408, %v408
      %v441 = vpack.c.b16 %v409, %v409
      %v442 = vpack.c.b16 %v410, %v410
      %v443 = vpack.c.b16 %v411, %v411
      %vm476 = vcmask 60416
      %477 = vst.msk [vmem:[%s172] sm:$0xf] %vm476, %v412
      %478 = vst.msk [vmem:[%s172 + $0x4] sm:$0xf] %vm476, %v413
      %479 = vst.msk [vmem:[%s172 + $0x8] sm:$0xf] %vm476, %v414
      %480 = vst.msk [vmem:[%s172 + $0xc] sm:$0xf] %vm476, %v415
      %481 = vst.msk [vmem:[%s172 + $0x10] sm:$0xf] %vm476, %v416
      %482 = vst.msk [vmem:[%s172 + $0x14] sm:$0xf] %vm476, %v417
      %483 = vst.msk [vmem:[%s172 + $0x18] sm:$0xf] %vm476, %v418
      %484 = vst.msk [vmem:[%s172 + $0x1c] sm:$0xf] %vm476, %v419
      %485 = vst.msk [vmem:[%s172 + $0x20] sm:$0xf] %vm476, %v420
      %486 = vst.msk [vmem:[%s172 + $0x24] sm:$0xf] %vm476, %v421
      %487 = vst.msk [vmem:[%s172 + $0x28] sm:$0xf] %vm476, %v422
      %488 = vst.msk [vmem:[%s172 + $0x2c] sm:$0xf] %vm476, %v423
      %489 = vst.msk [vmem:[%s172 + $0x30] sm:$0xf] %vm476, %v424
      %490 = vst.msk [vmem:[%s172 + $0x34] sm:$0xf] %vm476, %v425
      %491 = vst.msk [vmem:[%s172 + $0x38] sm:$0xf] %vm476, %v426
      %492 = vst.msk [vmem:[%s172 + $0x3c] sm:$0xf] %vm476, %v427
      %493 = vst.msk [vmem:[%s172 + $0x40] sm:$0xf] %vm476, %v428
      %494 = vst.msk [vmem:[%s172 + $0x44] sm:$0xf] %vm476, %v429
      %495 = vst.msk [vmem:[%s172 + $0x48] sm:$0xf] %vm476, %v430
      %496 = vst.msk [vmem:[%s172 + $0x4c] sm:$0xf] %vm476, %v431
      %497 = vst.msk [vmem:[%s172 + $0x50] sm:$0xf] %vm476, %v432
      %498 = vst.msk [vmem:[%s172 + $0x54] sm:$0xf] %vm476, %v433
      %499 = vst.msk [vmem:[%s172 + $0x58] sm:$0xf] %vm476, %v434
      %500 = vst.msk [vmem:[%s172 + $0x5c] sm:$0xf] %vm476, %v435
      %501 = vst.msk [vmem:[%s172 + $0x60] sm:$0xf] %vm476, %v436
      %502 = vst.msk [vmem:[%s172 + $0x64] sm:$0xf] %vm476, %v437
      %503 = vst.msk [vmem:[%s172 + $0x68] sm:$0xf] %vm476, %v438
      %504 = vst.msk [vmem:[%s172 + $0x6c] sm:$0xf] %vm476, %v439
      %505 = vst.msk [vmem:[%s172 + $0x70] sm:$0xf] %vm476, %v440
      %506 = vst.msk [vmem:[%s172 + $0x74] sm:$0xf] %vm476, %v441
      %507 = vst.msk [vmem:[%s172 + $0x78] sm:$0xf] %vm476, %v442
      %508 = vst.msk [vmem:[%s172 + $0x7c] sm:$0xf] %vm476, %v443
      %s509 = smul.u32 32, %s14
      %p510 = scmp.lt.s32.totalorder %s509, 63
      %s511 = scalar_select %p510, %s509, 63
      %s512 = smul.addr %s511, 4
      %s513 = scalar_lea.vmem %s3, %s512
      // Predicated region
      $region33: #{double_conv.5} parent=31 // pred_check
        %p514 = pneg %p100
      $region34: #{double_conv.5} parent=31 // pred_check_branch
        %516 = sbr.rel (%p514) target = $region36
      $region35: #{double_conv.5} parent=31 // pred_region
        %s517 = smul.u32 32, %s14
      $region36: #{double_conv.5} parent=31 // pred_fallthru
        _
    $region32: #{double_conv.5} parent=5 // pred_fallthru
      _
    %p518 = scmp.le.s32.totalorder 2, %s9
    // Predicated region
    $region37: #{double_conv.5} parent=5 // pred_check
      %p519 = pneg %p518
    $region38: #{double_conv.5} parent=5 // pred_check_branch
      %521 = sbr.rel (%p519) target = $region40
    $region39: #{double_conv.5} parent=5 // pred_region
      %s522 = ssub.s32 %s9, 2
      // Predicated region
      $region41: #{double_conv.5} parent=39 // pred_check
        %p523 = pneg %p106
      $region42: #{double_conv.5} parent=39 // pred_check_branch
        %525 = sbr.rel (%p523) target = $region44
      $region43: #{double_conv.5} parent=39 // pred_region
        %s526 = smul.u32 32, %s15
        %p527 = scmp.lt.s32.totalorder %s526, 63
        %s528 = scalar_select %p527, %s526, 63
        %s529 = smul.addr %s528, 4
        %s530 = scalar_lea.vmem %s3, %s529
      $region44: #{double_conv.5} parent=39 // pred_fallthru
        _
    $region40: #{double_conv.5} parent=5 // pred_fallthru
      _
  $region6: #{double_conv.5} parent=0 // loop_footer
    %s13 = sadd.s32 1, %s9
  $region7: #{double_conv.5} parent=0 // loop_footer_branch
    %8 = sbr.rel target = $region3
  $region8: #{double_conv.5} parent=0 // loop_exit
    _

// kernel: double_conv.7
$region0: #{double_conv.7}
  #allocation0 [shape = 'u32[]', space=smem, size = 0x4, offset = 0x4, fixed_abs, tag = 'smem constant byte address 0x4 - core index']
  #allocation1 [shape = 'u32[144,128]{1,0:T(1,128)}', space=vmem, size = 0x12000, scoped, tag = 'internal scratch']
  %s0 = inlined_call_operand.vmem [shape: bf16[512,128], index: 0, kind: input, shape index: {}]
  %s1 = inlined_call_operand.vmem [shape: f32[1,128], index: 1, kind: input, shape index: {}]
  %s2 = inlined_call_operand.vmem [shape: f32[1,128], index: 2, kind: input, shape index: {}]
  %s3 = inlined_call_operand.vmem [shape: f32[512,8], index: 3, kind: output, shape index: {}]
  %s4 = sld [smem:[#allocation0]]
  $region45: #{double_conv.7} parent=0
    _
  %s6 = ssub.s32 1, %s4
  %s7 = scalar_select 0, %s6, %s4
  loop: start=0, step=1, limit=4
  $region2: #{double_conv.7} parent=0 // loop_pre_header
    _
  $region3: #{double_conv.7} parent=0 // loop_header
    %s9 = sphi 0, %s13
    %p10 = scmp.ge.s32.totalorder %s9, 4
    %s19 = sphi 0, %s21
    %s22 = sphi 0, %s19
    %s23 = sphi 0, %s22
    %s39 = sphi 0, %s23
    %s43 = sphi 0, %s43
    %s45 = sphi 0, %s43
    %s46 = sphi 0, %s45
    %s60 = sphi 0, %s46
    %s64 = sphi 0, %s64
    %s66 = sphi 0, %s64
    %s67 = sphi 0, %s66
    %s81 = sphi 0, %s67
    %s87 = sphi 0, %s89
    %s90 = sphi 0, %s87
    %s91 = sphi 0, %s90
    %s107 = sphi 0, %s91
  $region4: #{double_conv.7} parent=0 // loop_header_branch
    %12 = sbr.rel (%p10) target = $region8
  $region5: #{double_conv.7} parent=0 // loop_body
    %s14 = ssub.s32 %s9, 1
    %s15 = ssub.s32 %s9, 2
    %s16 = sadd.s32 %s9, 1
    %s17 = ssub.s32 %s9, %s16
    %p18 = scmp.eq.s32.totalorder %s17, 0
    %s20 = sadd.s32 %s19, 1
    %s21 = scalar_select %p18, %s19, %s20
    %p24 = pneg %p18
    %p25 = scmp.eq.s32.totalorder %s9, 1
    %p26 = por %p24, %p25
    %p27 = scmp.ne.s32.totalorder %s19, %s22
    %p28 = scmp.eq.s32.totalorder %s9, 0
    %p29 = por %p27, %p28
    %p30 = scmp.ne.s32.totalorder %s19, %s22
    %p31 = scmp.eq.s32.totalorder %s14, 1
    %p32 = por %p30, %p31
    %p33 = scmp.ne.s32.totalorder %s22, %s23
    %p34 = scmp.eq.s32.totalorder %s14, 0
    %p35 = por %p33, %p34
    %p36 = scmp.ne.s32.totalorder %s22, %s23
    %p37 = scmp.eq.s32.totalorder %s15, 1
    %p38 = por %p36, %p37
    %p40 = scmp.ne.s32.totalorder %s23, %s39
    %p41 = scmp.eq.s32.totalorder %s15, 0
    %p42 = por %p40, %p41
    %s44 = sadd.s32 %s43, 1
    %p47 = scmp.eq.s32.totalorder %s9, 1
    %p48 = scmp.ne.s32.totalorder %s43, %s45
    %p49 = scmp.eq.s32.totalorder %s9, 0
    %p50 = por %p48, %p49
    %p51 = scmp.ne.s32.totalorder %s43, %s45
    %p52 = scmp.eq.s32.totalorder %s14, 1
    %p53 = por %p51, %p52
    %p54 = scmp.ne.s32.totalorder %s45, %s46
    %p55 = scmp.eq.s32.totalorder %s14, 0
    %p56 = por %p54, %p55
    %p57 = scmp.ne.s32.totalorder %s45, %s46
    %p58 = scmp.eq.s32.totalorder %s15, 1
    %p59 = por %p57, %p58
    %p61 = scmp.ne.s32.totalorder %s46, %s60
    %p62 = scmp.eq.s32.totalorder %s15, 0
    %p63 = por %p61, %p62
    %s65 = sadd.s32 %s64, 1
    %p68 = scmp.eq.s32.totalorder %s9, 1
    %p69 = scmp.ne.s32.totalorder %s64, %s66
    %p70 = scmp.eq.s32.totalorder %s9, 0
    %p71 = por %p69, %p70
    %p72 = scmp.ne.s32.totalorder %s64, %s66
    %p73 = scmp.eq.s32.totalorder %s14, 1
    %p74 = por %p72, %p73
    %p75 = scmp.ne.s32.totalorder %s66, %s67
    %p76 = scmp.eq.s32.totalorder %s14, 0
    %p77 = por %p75, %p76
    %p78 = scmp.ne.s32.totalorder %s66, %s67
    %p79 = scmp.eq.s32.totalorder %s15, 1
    %p80 = por %p78, %p79
    %p82 = scmp.ne.s32.totalorder %s67, %s81
    %p83 = scmp.eq.s32.totalorder %s15, 0
    %p84 = por %p82, %p83
    %s85 = ssub.s32 %s9, %s16
    %p86 = scmp.eq.s32.totalorder %s85, 0
    %s88 = sadd.s32 %s87, 1
    %s89 = scalar_select %p86, %s87, %s88
    %p92 = pneg %p86
    %p93 = scmp.eq.s32.totalorder %s9, 1
    %p94 = por %p92, %p93
    %p95 = scmp.ne.s32.totalorder %s87, %s90
    %p96 = scmp.eq.s32.totalorder %s9, 0
    %p97 = por %p95, %p96
    %p98 = scmp.ne.s32.totalorder %s87, %s90
    %p99 = scmp.eq.s32.totalorder %s14, 1
    %p100 = por %p98, %p99
    %p101 = scmp.ne.s32.totalorder %s90, %s91
    %p102 = scmp.eq.s32.totalorder %s14, 0
    %p103 = por %p101, %p102
    %p104 = scmp.ne.s32.totalorder %s90, %s91
    %p105 = scmp.eq.s32.totalorder %s15, 1
    %p106 = por %p104, %p105
    %p108 = scmp.ne.s32.totalorder %s91, %s107
    %p109 = scmp.eq.s32.totalorder %s15, 0
    %p110 = por %p108, %p109
    %p111 = scmp.le.s32.totalorder 1, %s9
    %p112 = scmp.lt.s32.totalorder %s9, 3
    %p113 = pnand %p111, %p112
    %p114 = pneg %p113
    // Predicated region
    $region9: #{double_conv.7} parent=5 // pred_check
      _
    $region10: #{double_conv.7} parent=5 // pred_check_branch
      %116 = sbr.rel (%p113) target = $region12
    $region11: #{double_conv.7} parent=5 // pred_region
      %s117 = ssub.s32 %s9, 1
      // Predicated region
      $region13: #{double_conv.7} parent=11 // pred_check
        %p118 = pneg %p56
      $region14: #{double_conv.7} parent=11 // pred_check_branch
        %120 = sbr.rel (%p118) target = $region16
      $region15: #{double_conv.7} parent=11 // pred_region
        _
      $region16: #{double_conv.7} parent=11 // pred_fallthru
        _
      // Predicated region
      $region17: #{double_conv.7} parent=11 // pred_check
        %p121 = pneg %p77
      $region18: #{double_conv.7} parent=11 // pred_check_branch
        %123 = sbr.rel (%p121) target = $region20
      $region19: #{double_conv.7} parent=11 // pred_region
        _
      $region20: #{double_conv.7} parent=11 // pred_fallthru
        _
    $region12: #{double_conv.7} parent=5 // pred_fallthru
      _
    %p124 = scmp.lt.s32.totalorder %s9, 2
    // Predicated region
    $region21: #{double_conv.7} parent=5 // pred_check
      %p125 = pneg %p124
    $region22: #{double_conv.7} parent=5 // pred_check_branch
      %127 = sbr.rel (%p125) target = $region24
    $region23: #{double_conv.7} parent=5 // pred_region
      // Predicated region
      $region25: #{double_conv.7} parent=23 // pred_check
        %p128 = pneg %p29
      $region26: #{double_conv.7} parent=23 // pred_check_branch
        %130 = sbr.rel (%p128) target = $region28
      $region27: #{double_conv.7} parent=23 // pred_region
        %s131 = smul.u32 32, %s9
        %p132 = scmp.lt.s32.totalorder %s131, 63
        %s133 = scalar_select %p132, %s131, 63
        %s134 = smul.addr %s133, 4
        %s135 = scalar_lea.vmem %s0, %s134
        %s136 = smul.u32 32, %s9
      $region28: #{double_conv.7} parent=23 // pred_fallthru
        _
    $region24: #{double_conv.7} parent=5 // pred_fallthru
      _
    %p137 = scmp.le.s32.totalorder 1, %s9
    %p138 = scmp.lt.s32.totalorder %s9, 3
    %p139 = pnand %p137, %p138
    %p140 = pneg %p139
    // Predicated region
    $region29: #{double_conv.7} parent=5 // pred_check
      _
    $region30: #{double_conv.7} parent=5 // pred_check_branch
      %142 = sbr.rel (%p139) target = $region32
    $region31: #{double_conv.7} parent=5 // pred_region
      %s143 = ssub.s32 %s9, 1
      %s144 = smul.u32 32, %s14
      %p145 = scmp.lt.s32.totalorder %s144, 63
      %s146 = scalar_select %p145, %s144, 63
      %s147 = smul.addr %s146, 4
      %s148 = scalar_lea.vmem %s0, %s147
      %p149 = pneg %p35
      %p150 = pneg %p32
      %p151 = pneg %p56
      %p152 = pneg %p53
      %p153 = pneg %p77
      %p154 = pneg %p74
      %p155 = pneg %p103
      %p156 = pneg %p100
      %s157 = smul.u32 32, %s14
      %p158 = scmp.lt.s32.totalorder %s157, 63
      %s159 = scalar_select %p158, %s157, 63
      %s160 = smul.addr %s159, 8
      %s161 = scalar_lea.vmem %s3, %s160
      %s162 = smul.u32 32, %s14
      %p163 = scmp.lt.s32.totalorder %s162, 63
      %s164 = scalar_select %p163, %s162, 63
      %s165 = smul.addr %s164, 4
      %s166 = scalar_lea.vmem %s0, %s165
      %s167 = smul.u32 32, %s14
      %s168 = smul.u32 32, %s14
      %p169 = scmp.lt.s32.totalorder %s168, 63
      %s170 = scalar_select %p169, %s168, 63
      %s171 = smul.addr %s170, 8
      %s172 = scalar_lea.vmem %s3, %s171
      %s173 = smul.u32 32, %s14
      %v174 = vld [vmem:[%s166] sm:$0xf]
      %v175 = vld [vmem:[%s166 + $0x4] sm:$0xf]
      %v176 = vld [vmem:[%s166 + $0x8] sm:$0xf]
      %v177 = vld [vmem:[%s166 + $0xc] sm:$0xf]
      %v178 = vld [vmem:[%s166 + $0x10] sm:$0xf]
      %v179 = vld [vmem:[%s166 + $0x14] sm:$0xf]
      %v180 = vld [vmem:[%s166 + $0x18] sm:$0xf]
      %v181 = vld [vmem:[%s166 + $0x1c] sm:$0xf]
      %v182 = vld [vmem:[%s166 + $0x20] sm:$0xf]
      %v183 = vld [vmem:[%s166 + $0x24] sm:$0xf]
      %v184 = vld [vmem:[%s166 + $0x28] sm:$0xf]
      %v185 = vld [vmem:[%s166 + $0x2c] sm:$0xf]
      %v186 = vld [vmem:[%s166 + $0x30] sm:$0xf]
      %v187 = vld [vmem:[%s166 + $0x34] sm:$0xf]
      %v188 = vld [vmem:[%s166 + $0x38] sm:$0xf]
      %v189 = vld [vmem:[%s166 + $0x3c] sm:$0xf]
      %v190 = vld [vmem:[%s166 + $0x40] sm:$0xf]
      %v191 = vld [vmem:[%s166 + $0x44] sm:$0xf]
      %v192 = vld [vmem:[%s166 + $0x48] sm:$0xf]
      %v193 = vld [vmem:[%s166 + $0x4c] sm:$0xf]
      %v194 = vld [vmem:[%s166 + $0x50] sm:$0xf]
      %v195 = vld [vmem:[%s166 + $0x54] sm:$0xf]
      %v196 = vld [vmem:[%s166 + $0x58] sm:$0xf]
      %v197 = vld [vmem:[%s166 + $0x5c] sm:$0xf]
      %v198 = vld [vmem:[%s166 + $0x60] sm:$0xf]
      %v199 = vld [vmem:[%s166 + $0x64] sm:$0xf]
      %v200 = vld [vmem:[%s166 + $0x68] sm:$0xf]
      %v201 = vld [vmem:[%s166 + $0x6c] sm:$0xf]
      %v202 = vld [vmem:[%s166 + $0x70] sm:$0xf]
      %v203 = vld [vmem:[%s166 + $0x74] sm:$0xf]
      %v204 = vld [vmem:[%s166 + $0x78] sm:$0xf]
      %v205 = vld [vmem:[%s166 + $0x7c] sm:$0xf]
      %v206 = vunpack.c.l.bf16 %v174
      %v207 = vunpack.c.l.bf16 %v175
      %v208 = vunpack.c.l.bf16 %v176
      %v209 = vunpack.c.l.bf16 %v177
      %v210 = vunpack.c.l.bf16 %v178
      %v211 = vunpack.c.l.bf16 %v179
      %v212 = vunpack.c.l.bf16 %v180
      %v213 = vunpack.c.l.bf16 %v181
      %v214 = vunpack.c.l.bf16 %v182
      %v215 = vunpack.c.l.bf16 %v183
      %v216 = vunpack.c.l.bf16 %v184
      %v217 = vunpack.c.l.bf16 %v185
      %v218 = vunpack.c.l.bf16 %v186
      %v219 = vunpack.c.l.bf16 %v187
      %v220 = vunpack.c.l.bf16 %v188
      %v221 = vunpack.c.l.bf16 %v189
      %v222 = vunpack.c.l.bf16 %v190
      %v223 = vunpack.c.l.bf16 %v191
      %v224 = vunpack.c.l.bf16 %v192
      %v225 = vunpack.c.l.bf16 %v193
      %v226 = vunpack.c.l.bf16 %v194
      %v227 = vunpack.c.l.bf16 %v195
      %v228 = vunpack.c.l.bf16 %v196
      %v229 = vunpack.c.l.bf16 %v197
      %v230 = vunpack.c.l.bf16 %v198
      %v231 = vunpack.c.l.bf16 %v199
      %v232 = vunpack.c.l.bf16 %v200
      %v233 = vunpack.c.l.bf16 %v201
      %v234 = vunpack.c.l.bf16 %v202
      %v235 = vunpack.c.l.bf16 %v203
      %v236 = vunpack.c.l.bf16 %v204
      %v237 = vunpack.c.l.bf16 %v205
      %v238 = vld [vmem:[%s1] sm:$0x1]
      %v240 = vlaneseq
      %v241 = vshrl.u32 %v240, 7
      %v242 = vsub.s32 0, %v241
      %v243 = vrot.slane %v238, %v242
      %v245 = vmul.f32 %v206, %v243
      %v246 = vmul.f32 %v207, %v243
      %v247 = vmul.f32 %v208, %v243
      %v248 = vmul.f32 %v209, %v243
      %v249 = vmul.f32 %v210, %v243
      %v250 = vmul.f32 %v211, %v243
      %v251 = vmul.f32 %v212, %v243
      %v252 = vmul.f32 %v213, %v243
      %v253 = vmul.f32 %v214, %v243
      %v254 = vmul.f32 %v215, %v243
      %v255 = vmul.f32 %v216, %v243
      %v256 = vmul.f32 %v217, %v243
      %v257 = vmul.f32 %v218, %v243
      %v258 = vmul.f32 %v219, %v243
      %v259 = vmul.f32 %v220, %v243
      %v260 = vmul.f32 %v221, %v243
      %v261 = vmul.f32 %v222, %v243
      %v262 = vmul.f32 %v223, %v243
      %v263 = vmul.f32 %v224, %v243
      %v264 = vmul.f32 %v225, %v243
      %v265 = vmul.f32 %v226, %v243
      %v266 = vmul.f32 %v227, %v243
      %v267 = vmul.f32 %v228, %v243
      %v268 = vmul.f32 %v229, %v243
      %v269 = vmul.f32 %v230, %v243
      %v270 = vmul.f32 %v231, %v243
      %v271 = vmul.f32 %v232, %v243
      %v272 = vmul.f32 %v233, %v243
      %v273 = vmul.f32 %v234, %v243
      %v274 = vmul.f32 %v235, %v243
      %v275 = vmul.f32 %v236, %v243
      %v276 = vmul.f32 %v237, %v243
      %v277 = vld [vmem:[%s2] sm:$0x1]
      %v279 = vlaneseq
      %v280 = vshrl.u32 %v279, 7
      %v281 = vsub.s32 0, %v280
      %v282 = vrot.slane %v277, %v281
      %v284 = vadd.f32 %v245, %v282
      %v285 = vadd.f32 %v246, %v282
      %v286 = vadd.f32 %v247, %v282
      %v287 = vadd.f32 %v248, %v282
      %v288 = vadd.f32 %v249, %v282
      %v289 = vadd.f32 %v250, %v282
      %v290 = vadd.f32 %v251, %v282
      %v291 = vadd.f32 %v252, %v282
      %v292 = vadd.f32 %v253, %v282
      %v293 = vadd.f32 %v254, %v282
      %v294 = vadd.f32 %v255, %v282
      %v295 = vadd.f32 %v256, %v282
      %v296 = vadd.f32 %v257, %v282
      %v297 = vadd.f32 %v258, %v282
      %v298 = vadd.f32 %v259, %v282
      %v299 = vadd.f32 %v260, %v282
      %v300 = vadd.f32 %v261, %v282
      %v301 = vadd.f32 %v262, %v282
      %v302 = vadd.f32 %v263, %v282
      %v303 = vadd.f32 %v264, %v282
      %v304 = vadd.f32 %v265, %v282
      %v305 = vadd.f32 %v266, %v282
      %v306 = vadd.f32 %v267, %v282
      %v307 = vadd.f32 %v268, %v282
      %v308 = vadd.f32 %v269, %v282
      %v309 = vadd.f32 %v270, %v282
      %v310 = vadd.f32 %v271, %v282
      %v311 = vadd.f32 %v272, %v282
      %v312 = vadd.f32 %v273, %v282
      %v313 = vadd.f32 %v274, %v282
      %v314 = vadd.f32 %v275, %v282
      %v315 = vadd.f32 %v276, %v282
      %v316 = vmax.f32 %v284, 0.0
      %v317 = vmax.f32 %v285, 0.0
      %v318 = vmax.f32 %v286, 0.0
      %v319 = vmax.f32 %v287, 0.0
      %v320 = vmax.f32 %v288, 0.0
      %v321 = vmax.f32 %v289, 0.0
      %v322 = vmax.f32 %v290, 0.0
      %v323 = vmax.f32 %v291, 0.0
      %v324 = vmax.f32 %v292, 0.0
      %v325 = vmax.f32 %v293, 0.0
      %v326 = vmax.f32 %v294, 0.0
      %v327 = vmax.f32 %v295, 0.0
      %v328 = vmax.f32 %v296, 0.0
      %v329 = vmax.f32 %v297, 0.0
      %v330 = vmax.f32 %v298, 0.0
      %v331 = vmax.f32 %v299, 0.0
      %v332 = vmax.f32 %v300, 0.0
      %v333 = vmax.f32 %v301, 0.0
      %v334 = vmax.f32 %v302, 0.0
      %v335 = vmax.f32 %v303, 0.0
      %v336 = vmax.f32 %v304, 0.0
      %v337 = vmax.f32 %v305, 0.0
      %v338 = vmax.f32 %v306, 0.0
      %v339 = vmax.f32 %v307, 0.0
      %v340 = vmax.f32 %v308, 0.0
      %v341 = vmax.f32 %v309, 0.0
      %v342 = vmax.f32 %v310, 0.0
      %v343 = vmax.f32 %v311, 0.0
      %v344 = vmax.f32 %v312, 0.0
      %v345 = vmax.f32 %v313, 0.0
      %v346 = vmax.f32 %v314, 0.0
      %v347 = vmax.f32 %v315, 0.0
      %vm348 = vcmask 64512
      %349 = vst.msk [vmem:[%s172] sm:$0xff] %vm348, %v316
      %350 = vst.msk [vmem:[%s172 + $0x8] sm:$0xff] %vm348, %v317
      %351 = vst.msk [vmem:[%s172 + $0x10] sm:$0xff] %vm348, %v318
      %352 = vst.msk [vmem:[%s172 + $0x18] sm:$0xff] %vm348, %v319
      %353 = vst.msk [vmem:[%s172 + $0x20] sm:$0xff] %vm348, %v320
      %354 = vst.msk [vmem:[%s172 + $0x28] sm:$0xff] %vm348, %v321
      %355 = vst.msk [vmem:[%s172 + $0x30] sm:$0xff] %vm348, %v322
      %356 = vst.msk [vmem:[%s172 + $0x38] sm:$0xff] %vm348, %v323
      %357 = vst.msk [vmem:[%s172 + $0x40] sm:$0xff] %vm348, %v324
      %358 = vst.msk [vmem:[%s172 + $0x48] sm:$0xff] %vm348, %v325
      %359 = vst.msk [vmem:[%s172 + $0x50] sm:$0xff] %vm348, %v326
      %360 = vst.msk [vmem:[%s172 + $0x58] sm:$0xff] %vm348, %v327
      %361 = vst.msk [vmem:[%s172 + $0x60] sm:$0xff] %vm348, %v328
      %362 = vst.msk [vmem:[%s172 + $0x68] sm:$0xff] %vm348, %v329
      %363 = vst.msk [vmem:[%s172 + $0x70] sm:$0xff] %vm348, %v330
      %364 = vst.msk [vmem:[%s172 + $0x78] sm:$0xff] %vm348, %v331
      %365 = vst.msk [vmem:[%s172 + $0x80] sm:$0xff] %vm348, %v332
      %366 = vst.msk [vmem:[%s172 + $0x88] sm:$0xff] %vm348, %v333
      %367 = vst.msk [vmem:[%s172 + $0x90] sm:$0xff] %vm348, %v334
      %368 = vst.msk [vmem:[%s172 + $0x98] sm:$0xff] %vm348, %v335
      %369 = vst.msk [vmem:[%s172 + $0xa0] sm:$0xff] %vm348, %v336
      %370 = vst.msk [vmem:[%s172 + $0xa8] sm:$0xff] %vm348, %v337
      %371 = vst.msk [vmem:[%s172 + $0xb0] sm:$0xff] %vm348, %v338
      %372 = vst.msk [vmem:[%s172 + $0xb8] sm:$0xff] %vm348, %v339
      %373 = vst.msk [vmem:[%s172 + $0xc0] sm:$0xff] %vm348, %v340
      %374 = vst.msk [vmem:[%s172 + $0xc8] sm:$0xff] %vm348, %v341
      %375 = vst.msk [vmem:[%s172 + $0xd0] sm:$0xff] %vm348, %v342
      %376 = vst.msk [vmem:[%s172 + $0xd8] sm:$0xff] %vm348, %v343
      %377 = vst.msk [vmem:[%s172 + $0xe0] sm:$0xff] %vm348, %v344
      %378 = vst.msk [vmem:[%s172 + $0xe8] sm:$0xff] %vm348, %v345
      %379 = vst.msk [vmem:[%s172 + $0xf0] sm:$0xff] %vm348, %v346
      %380 = vst.msk [vmem:[%s172 + $0xf8] sm:$0xff] %vm348, %v347
      %s381 = smul.u32 32, %s14
      %p382 = scmp.lt.s32.totalorder %s381, 63
      %s383 = scalar_select %p382, %s381, 63
      %s384 = smul.addr %s383, 8
      %s385 = scalar_lea.vmem %s3, %s384
      // Predicated region
      $region33: #{double_conv.7} parent=31 // pred_check
        %p386 = pneg %p100
      $region34: #{double_conv.7} parent=31 // pred_check_branch
        %388 = sbr.rel (%p386) target = $region36
      $region35: #{double_conv.7} parent=31 // pred_region
        %s389 = smul.u32 32, %s14
      $region36: #{double_conv.7} parent=31 // pred_fallthru
        _
    $region32: #{double_conv.7} parent=5 // pred_fallthru
      _
    %p390 = scmp.le.s32.totalorder 2, %s9
    // Predicated region
    $region37: #{double_conv.7} parent=5 // pred_check
      %p391 = pneg %p390
    $region38: #{double_conv.7} parent=5 // pred_check_branch
      %393 = sbr.rel (%p391) target = $region40
    $region39: #{double_conv.7} parent=5 // pred_region
      %s394 = ssub.s32 %s9, 2
      // Predicated region
      $region41: #{double_conv.7} parent=39 // pred_check
        %p395 = pneg %p106
      $region42: #{double_conv.7} parent=39 // pred_check_branch
        %397 = sbr.rel (%p395) target = $region44
      $region43: #{double_conv.7} parent=39 // pred_region
        %s398 = smul.u32 32, %s15
        %p399 = scmp.lt.s32.totalorder %s398, 63
        %s400 = scalar_select %p399, %s398, 63
        %s401 = smul.addr %s400, 8
        %s402 = scalar_lea.vmem %s3, %s401
      $region44: #{double_conv.7} parent=39 // pred_fallthru
        _
    $region40: #{double_conv.7} parent=5 // pred_fallthru
      _
  $region6: #{double_conv.7} parent=0 // loop_footer
    %s13 = sadd.s32 1, %s9
  $region7: #{double_conv.7} parent=0 // loop_footer_branch
    %8 = sbr.rel target = $region3
  $region8: #{double_conv.7} parent=0 // loop_exit
    _

</llo_original>
